<compile_context>
chip_gen: v6e
topology: v6e:2x2x1
jax: 0.10.0
libtpu: 0.0.40
codegen_flags: <defaults>
</compile_context>

<pallas_src>
import functools
import math

import jax
import jax.numpy as jnp
from jax.experimental import pallas as pl
from jax.experimental.pallas import tpu as pltpu


def _layer_norm(x, a, b, eps=1e-6):
    # torch source: mean over last dim, std with Bessel correction, /(std + eps).
    # Two-pass centered form; (x - mean) is reused for variance and normalize.
    mean = jnp.mean(x, axis=-1, keepdims=True)
    xc = x - mean
    var = jnp.sum(xc * xc, axis=-1, keepdims=True) / (x.shape[-1] - 1)
    std = jnp.sqrt(var)
    return a * xc / (std + eps) + b


def encoder_layer_kernel(
    x_ref, mask_ref,
    ln1a_ref, ln1b_ref,
    wqkv_ref, bqkv_ref,
    wo_ref, bo_ref,
    ln2a_ref, ln2b_ref,
    w1_ref, b1_ref, w2_ref, b2_ref,
    o_ref,
    *, bt, seq, num_heads, d_k,
):
    S, H, Dk = seq, num_heads, d_k
    D = H * Dk
    N = bt * S          # tokens per grid step
    G = H * bt          # batched attention groups (head-major, batch-minor)

    x = x_ref[...].astype(jnp.float32)                        # (N, D)
    mask = mask_ref[...].astype(jnp.float32)                  # (bt, 1, S)
    # Additive padding-mask bias, hoisted once; replicated per head with a
    # leading-axis concat so group order matches q/k/v (h-major, b-minor).
    mb = jnp.where(mask == 0.0, jnp.float32(-1e9), jnp.float32(0.0))
    mask_bias = jnp.concatenate([mb] * H, axis=0)             # (G, 1, S)

    # ---- Sublayer 1: pre-LN multi-head self-attention + residual ----
    xn = _layer_norm(x, ln1a_ref[...], ln1b_ref[...])
    # Fused QKV projection: one (N,D)@(D,3D) MXU matmul, bf16 operands, f32 acc.
    qkv = jnp.dot(xn.astype(jnp.bfloat16), wqkv_ref[...],
                  preferred_element_type=jnp.float32) + bqkv_ref[...]      # (N, 3D)

    # Head-major batched tensors (G, S, Dk).  The lane slices at Dk offsets are
    # the single unavoidable relayout (vreg-aligned and free once Dk >= 128);
    # all downstream matmuls are batched over G instead of an unrolled H loop.
    def to_heads(base):
        slabs = [qkv[:, base + h * Dk: base + (h + 1) * Dk].reshape(bt, S, Dk)
                 for h in range(H)]
        return jnp.stack(slabs, axis=0).reshape(G, S, Dk)

    q = to_heads(0)
    k = to_heads(D)
    v = to_heads(2 * D)

    # Batched scores, contracting the Dk axis of both operands (no kh.T).
    # TODO(synk): confirm in the bundle dump that this lowers without a vxpose;
    # if not, build K with Dk on the sublane axis instead.
    scale = 1.0 / math.sqrt(Dk)
    sc = jnp.einsum('gqd,gkd->gqk', q, k,
                    preferred_element_type=jnp.float32) * scale            # (G,S,S)
    sc = sc + mask_bias
    sc = sc - jnp.max(sc, axis=-1, keepdims=True)
    e = jnp.exp(sc)
    p = e * pl.reciprocal(jnp.sum(e, axis=-1, keepdims=True), approx=True)
    ctx = jnp.einsum('gqk,gkd->gqd', p.astype(jnp.bfloat16),
                     v.astype(jnp.bfloat16),
                     preferred_element_type=jnp.float32)                   # (G,S,Dk)

    # Output projection without lane-concat: contract each head's context with
    # its (Dk, D) slice of Wo (batched over H), then reduce heads with cheap
    # leading-axis VPU adds.
    ctx_h = ctx.reshape(H, N, Dk)                                          # (H,N,Dk)
    attn_h = jnp.einsum('hnd,hdf->hnf', ctx_h.astype(jnp.bfloat16), wo_ref[...],
                        preferred_element_type=jnp.float32)                # (H,N,D)
    attn = jnp.sum(attn_h, axis=0) + bo_ref[...]                           # (N, D)
    x1 = x + attn                       # dropout == identity (inference)

    # ---- Sublayer 2: pre-LN position-wise feed-forward + residual ----
    xn2 = _layer_norm(x1, ln2a_ref[...], ln2b_ref[...])
    hdn = jnp.maximum(
        jnp.dot(xn2.astype(jnp.bfloat16), w1_ref[...],
                preferred_element_type=jnp.float32) + b1_ref[...], 0.0)
    ff = jnp.dot(hdn.astype(jnp.bfloat16), w2_ref[...],
                 preferred_element_type=jnp.float32) + b2_ref[...]
    # Lane-dense store: last dim D is a multiple of 128 -> unmasked vst.
    o_ref[...] = (x1 + ff).astype(o_ref.dtype)


def encoder_layer(x, mask, kernel_params, *, num_heads, batch_block=None):
    """x: (B, S, D) f32; mask: (B, 1, S) f32 with 1 = keep, 0 = mask."""
    B, S, D = x.shape
    d_k = D // num_heads
    bt = batch_block if batch_block is not None else B
    assert B % bt == 0, "batch_block must divide batch"
    nb = B // bt
    assert D % 128 == 0, "lane-dense path expects D % 128 == 0 (else flatten rows)"

    x2d = x.reshape(B * S, D)      # token-major 2-D slab (free in the wrapper)

    def full(arr):                 # whole-array block, resident across the grid
        nd = arr.ndim
        return pl.BlockSpec(arr.shape, lambda i, _nd=nd: (0,) * _nd)

    kernel = functools.partial(encoder_layer_kernel, bt=bt, seq=S,
                               num_heads=num_heads, d_k=d_k)
    out = pl.pallas_call(
        kernel,
        out_shape=jax.ShapeDtypeStruct((B * S, D), x.dtype),
        grid_spec=pltpu.PrefetchScalarGridSpec(
            num_scalar_prefetch=0,
            grid=(nb,),                                        # bt batch elems / step
            in_specs=[
                pl.BlockSpec((bt * S, D), lambda i: (i, 0)),   # x tokens
                pl.BlockSpec((bt, 1, S), lambda i: (i, 0, 0)), # mask
            ] + [full(p) for p in kernel_params],
            out_specs=pl.BlockSpec((bt * S, D), lambda i: (i, 0)),
        ),
        compiler_params=pltpu.CompilerParams(
            dimension_semantics=("parallel",),                 # megacore on v7x
        ),
    )(x2d, mask, *kernel_params)
    return out.reshape(B, S, D)


# ---------------- pure-JAX reference (f32, full DxD weights) ----------------
def _ref_forward(x, mask, p, num_heads):
    (ln1a, ln1b, Wq, bq, Wk, bk, Wv, bv, Wo, bo, ln2a, ln2b, W1, b1, W2, b2) = p
    B, S, D = x.shape
    dk = D // num_heads

    xn = _layer_norm(x, ln1a, ln1b)
    q, k, v = xn @ Wq + bq, xn @ Wk + bk, xn @ Wv + bv
    split = lambda t: t.reshape(B, S, num_heads, dk).transpose(0, 2, 1, 3)
    qh, kh, vh = split(q), split(k), split(v)
    sc = jnp.einsum('bhqd,bhkd->bhqk', qh, kh) / jnp.sqrt(dk)
    sc = jnp.where(mask[:, None, :, :] == 0.0, -1e9, sc)
    pr = jax.nn.softmax(sc, axis=-1)
    o = jnp.einsum('bhqk,bhkd->bhqd', pr, vh).transpose(0, 2, 1, 3).reshape(B, S, D)
    x1 = x + (o @ Wo + bo)

    xn2 = _layer_norm(x1, ln2a, ln2b)
    ff = jnp.maximum(xn2 @ W1 + b1, 0.0) @ W2 + b2
    return x1 + ff


if __name__ == "__main__":
    B, S, D, H, F = 4, 8, 128, 4, 256
    DK = D // H
    BT = 2                              # batch elements folded per grid step

    key = jax.random.PRNGKey(0)
    ks = jax.random.split(key, 16)
    init = lambda k, shape, s=0.05: (s * jax.random.normal(k, shape)).astype(jnp.float32)

    x = init(ks[0], (B, S, D), 1.0)
    # padding mask: mask the last positions of batch elements 1 and 3
    mask = (jnp.ones((B, 1, S), jnp.float32)
            .at[1, 0, -2:].set(0.0)
            .at[3, 0, -3:].set(0.0))

    # full f32 parameters, (in, out) layout (y = x @ W + b == torch's x @ W.T + b)
    ln1a, ln1b = jnp.ones((D,), jnp.float32), jnp.zeros((D,), jnp.float32)
    ln2a, ln2b = jnp.ones((D,), jnp.float32), jnp.zeros((D,), jnp.float32)
    Wq, bq = init(ks[1], (D, D)), init(ks[2], (D,))
    Wk, bk = init(ks[3], (D, D)), init(ks[4], (D,))
    Wv, bv = init(ks[5], (D, D)), init(ks[6], (D,))
    Wo, bo = init(ks[7], (D, D)), init(ks[8], (D,))
    W1, b1 = init(ks[9], (D, F)), init(ks[10], (F,))
    W2, b2 = init(ks[11], (F, D)), init(ks[12], (D,))

    full_params = (ln1a, ln1b, Wq, bq, Wk, bk, Wv, bv, Wo, bo, ln2a, ln2b, W1, b1, W2, b2)

    # Kernel params: fused QKV weight/bias, Wo pre-reshaped per head (H, Dk, D);
    # matmul weights stored bf16 (f32 accumulation in-kernel), LN params and
    # biases kept f32.
    Wqkv = jnp.concatenate([Wq, Wk, Wv], axis=1)              # (D, 3D)
    bqkv = jnp.concatenate([bq, bk, bv], axis=0)              # (3D,)
    Wo_heads = Wo.reshape(H, DK, D)                           # (H, Dk, D)
    kernel_params = (
        ln1a.reshape(1, D), ln1b.reshape(1, D),
        Wqkv.astype(jnp.bfloat16), bqkv.reshape(1, 3 * D),
        Wo_heads.astype(jnp.bfloat16), bo.reshape(1, D),
        ln2a.reshape(1, D), ln2b.reshape(1, D),
        W1.astype(jnp.bfloat16), b1.reshape(1, F),
        W2.astype(jnp.bfloat16), b2.reshape(1, D),
    )

    out = encoder_layer(x, mask, kernel_params, num_heads=H, batch_block=BT)
    out = jax.block_until_ready(out)

    ref = _ref_forward(x, mask, full_params, num_heads=H)
    assert out.shape == (B, S, D) and out.dtype == jnp.float32
    # Tolerance accounts for bf16 MXU operands + approx reciprocal (f32 accumulation).
    assert jnp.allclose(out, ref, rtol=2e-2, atol=2e-2), (
        float(jnp.max(jnp.abs(out - ref))))
    print("KERNEL_OK")
</pallas_src>

<mosaic_0001>
module attributes {stable_mosaic.version = 11 : i64} {
  func.func @encoder_layer_kernel(%arg0: i32, %arg1: memref<16x128xf32, #tpu.memory_space<vmem>>, %arg2: memref<2x1x8xf32, #tpu.memory_space<vmem>>, %arg3: memref<1x128xf32, #tpu.memory_space<vmem>>, %arg4: memref<1x128xf32, #tpu.memory_space<vmem>>, %arg5: memref<128x384xbf16, #tpu.memory_space<vmem>>, %arg6: memref<1x384xf32, #tpu.memory_space<vmem>>, %arg7: memref<4x32x128xbf16, #tpu.memory_space<vmem>>, %arg8: memref<1x128xf32, #tpu.memory_space<vmem>>, %arg9: memref<1x128xf32, #tpu.memory_space<vmem>>, %arg10: memref<1x128xf32, #tpu.memory_space<vmem>>, %arg11: memref<128x256xbf16, #tpu.memory_space<vmem>>, %arg12: memref<1x256xf32, #tpu.memory_space<vmem>>, %arg13: memref<256x128xbf16, #tpu.memory_space<vmem>>, %arg14: memref<1x128xf32, #tpu.memory_space<vmem>>, %arg15: memref<16x128xf32, #tpu.memory_space<vmem>>) attributes {dimension_semantics = [#tpu.dimension_semantics<parallel>], iteration_bounds = array<i64: 2>, scalar_prefetch = 0 : i64, scratch_operands = 0 : i64, tpu.core_type = #tpu.core_type<tc>, window_params = [{transform_indices = @transform_0, window_bounds = array<i64: 16, 128>}, {transform_indices = @transform_1, window_bounds = array<i64: 2, 1, 8>}, {pipeline_mode = #tpu.pipeline_mode<synchronous>, transform_indices = @transform_2, window_bounds = array<i64: 1, 128>}, {pipeline_mode = #tpu.pipeline_mode<synchronous>, transform_indices = @transform_3, window_bounds = array<i64: 1, 128>}, {pipeline_mode = #tpu.pipeline_mode<synchronous>, transform_indices = @transform_4, window_bounds = array<i64: 128, 384>}, {pipeline_mode = #tpu.pipeline_mode<synchronous>, transform_indices = @transform_5, window_bounds = array<i64: 1, 384>}, {pipeline_mode = #tpu.pipeline_mode<synchronous>, transform_indices = @transform_6, window_bounds = array<i64: 4, 32, 128>}, {pipeline_mode = #tpu.pipeline_mode<synchronous>, transform_indices = @transform_7, window_bounds = array<i64: 1, 128>}, {pipeline_mode = #tpu.pipeline_mode<synchronous>, transform_indices = @transform_8, window_bounds = array<i64: 1, 128>}, {pipeline_mode = #tpu.pipeline_mode<synchronous>, transform_indices = @transform_9, window_bounds = array<i64: 1, 128>}, {pipeline_mode = #tpu.pipeline_mode<synchronous>, transform_indices = @transform_10, window_bounds = array<i64: 128, 256>}, {pipeline_mode = #tpu.pipeline_mode<synchronous>, transform_indices = @transform_11, window_bounds = array<i64: 1, 256>}, {pipeline_mode = #tpu.pipeline_mode<synchronous>, transform_indices = @transform_12, window_bounds = array<i64: 256, 128>}, {pipeline_mode = #tpu.pipeline_mode<synchronous>, transform_indices = @transform_13, window_bounds = array<i64: 1, 128>}, {transform_indices = @transform_14, window_bounds = array<i64: 16, 128>}]} {
    %c0 = arith.constant 0 : index
    %c0_0 = arith.constant 0 : index
    %0 = vector.load %arg1[%c0, %c0_0] : memref<16x128xf32, #tpu.memory_space<vmem>>, vector<16x128xf32>
    %c0_1 = arith.constant 0 : index
    %c0_2 = arith.constant 0 : index
    %c0_3 = arith.constant 0 : index
    %1 = vector.load %arg2[%c0_1, %c0_2, %c0_3] : memref<2x1x8xf32, #tpu.memory_space<vmem>>, vector<2x1x8xf32>
    %cst = arith.constant 0.000000e+00 : f32
    %2 = vector.broadcast %cst : f32 to vector<2x1x8xf32>
    %3 = arith.cmpf oeq, %1, %2 : vector<2x1x8xf32>
    %cst_4 = arith.constant -1.000000e+09 : f32
    %cst_5 = arith.constant 0.000000e+00 : f32
    %4 = vector.broadcast %cst_4 : f32 to vector<2x1x8xf32>
    %5 = vector.broadcast %cst_5 : f32 to vector<2x1x8xf32>
    %6 = arith.select %3, %4, %5 : vector<2x1x8xi1>, vector<2x1x8xf32>
    %7 = tpu.concatenate %6, %6, %6, %6 in 0 : vector<2x1x8xf32>, vector<2x1x8xf32>, vector<2x1x8xf32>, vector<2x1x8xf32> -> vector<8x1x8xf32>
    %c0_6 = arith.constant 0 : index
    %c0_7 = arith.constant 0 : index
    %8 = vector.load %arg3[%c0_6, %c0_7] : memref<1x128xf32, #tpu.memory_space<vmem>>, vector<1x128xf32>
    %c0_8 = arith.constant 0 : index
    %c0_9 = arith.constant 0 : index
    %9 = vector.load %arg4[%c0_8, %c0_9] : memref<1x128xf32, #tpu.memory_space<vmem>>, vector<1x128xf32>
    %cst_10 = arith.constant dense<0.000000e+00> : vector<16xf32>
    %10 = vector.multi_reduction <add>, %0, %cst_10 [1] : vector<16x128xf32> to vector<16xf32>
    %11 = vector.shape_cast %10 : vector<16xf32> to vector<16x1xf32>
    %cst_11 = arith.constant 1.280000e+02 : f32
    %12 = vector.broadcast %cst_11 : f32 to vector<16x1xf32>
    %13 = arith.divf %11, %12 : vector<16x1xf32>
    %14 = vector.broadcast %13 : vector<16x1xf32> to vector<16x128xf32>
    %15 = arith.subf %0, %14 : vector<16x128xf32>
    %16 = arith.mulf %15, %15 : vector<16x128xf32>
    %cst_12 = arith.constant dense<0.000000e+00> : vector<16xf32>
    %17 = vector.multi_reduction <add>, %16, %cst_12 [1] : vector<16x128xf32> to vector<16xf32>
    %18 = vector.shape_cast %17 : vector<16xf32> to vector<16x1xf32>
    %cst_13 = arith.constant 1.270000e+02 : f32
    %19 = vector.broadcast %cst_13 : f32 to vector<16x1xf32>
    %20 = arith.divf %18, %19 : vector<16x1xf32>
    %21 = math.sqrt %20 : vector<16x1xf32>
    %22 = vector.broadcast %8 : vector<1x128xf32> to vector<16x128xf32>
    %23 = arith.mulf %22, %15 : vector<16x128xf32>
    %cst_14 = arith.constant 9.99999997E-7 : f32
    %24 = vector.broadcast %cst_14 : f32 to vector<16x1xf32>
    %25 = arith.addf %21, %24 : vector<16x1xf32>
    %26 = vector.broadcast %25 : vector<16x1xf32> to vector<16x128xf32>
    %27 = arith.divf %23, %26 : vector<16x128xf32>
    %28 = vector.broadcast %9 : vector<1x128xf32> to vector<16x128xf32>
    %29 = arith.addf %27, %28 : vector<16x128xf32>
    %30 = arith.truncf %29 : vector<16x128xf32> to vector<16x128xbf16>
    %c0_15 = arith.constant 0 : index
    %c0_16 = arith.constant 0 : index
    %31 = vector.load %arg5[%c0_15, %c0_16] : memref<128x384xbf16, #tpu.memory_space<vmem>>, vector<128x384xbf16>
    %cst_17 = arith.constant dense<0.000000e+00> : vector<16x384xf32>
    %32 = tpu.matmul %30, %31, %cst_17 {dimension_numbers = #tpu.dot_dimension_numbers<[1], [0], [0], [1], [0, 0, 1, 1], [], []>} : vector<16x128xbf16>, vector<128x384xbf16>, vector<16x384xf32> -> vector<16x384xf32>
    %c0_18 = arith.constant 0 : index
    %c0_19 = arith.constant 0 : index
    %33 = vector.load %arg6[%c0_18, %c0_19] : memref<1x384xf32, #tpu.memory_space<vmem>>, vector<1x384xf32>
    %34 = vector.broadcast %33 : vector<1x384xf32> to vector<16x384xf32>
    %35 = arith.addf %32, %34 : vector<16x384xf32>
    %36 = vector.extract_strided_slice %35 {offsets = [0, 0], sizes = [16, 32], strides = [1, 1]} : vector<16x384xf32> to vector<16x32xf32>
    %37 = vector.shape_cast %36 : vector<16x32xf32> to vector<2x8x32xf32>
    %38 = vector.extract_strided_slice %35 {offsets = [0, 32], sizes = [16, 32], strides = [1, 1]} : vector<16x384xf32> to vector<16x32xf32>
    %39 = vector.shape_cast %38 : vector<16x32xf32> to vector<2x8x32xf32>
    %40 = vector.extract_strided_slice %35 {offsets = [0, 64], sizes = [16, 32], strides = [1, 1]} : vector<16x384xf32> to vector<16x32xf32>
    %41 = vector.shape_cast %40 : vector<16x32xf32> to vector<2x8x32xf32>
    %42 = vector.extract_strided_slice %35 {offsets = [0, 96], sizes = [16, 32], strides = [1, 1]} : vector<16x384xf32> to vector<16x32xf32>
    %43 = vector.shape_cast %42 : vector<16x32xf32> to vector<2x8x32xf32>
    %44 = vector.shape_cast %37 : vector<2x8x32xf32> to vector<1x2x8x32xf32>
    %45 = vector.shape_cast %39 : vector<2x8x32xf32> to vector<1x2x8x32xf32>
    %46 = vector.shape_cast %41 : vector<2x8x32xf32> to vector<1x2x8x32xf32>
    %47 = vector.shape_cast %43 : vector<2x8x32xf32> to vector<1x2x8x32xf32>
    %48 = tpu.concatenate %44, %45, %46, %47 in 0 : vector<1x2x8x32xf32>, vector<1x2x8x32xf32>, vector<1x2x8x32xf32>, vector<1x2x8x32xf32> -> vector<4x2x8x32xf32>
    %49 = vector.shape_cast %48 : vector<4x2x8x32xf32> to vector<8x8x32xf32>
    %50 = vector.extract_strided_slice %35 {offsets = [0, 128], sizes = [16, 32], strides = [1, 1]} : vector<16x384xf32> to vector<16x32xf32>
    %51 = vector.shape_cast %50 : vector<16x32xf32> to vector<2x8x32xf32>
    %52 = vector.extract_strided_slice %35 {offsets = [0, 160], sizes = [16, 32], strides = [1, 1]} : vector<16x384xf32> to vector<16x32xf32>
    %53 = vector.shape_cast %52 : vector<16x32xf32> to vector<2x8x32xf32>
    %54 = vector.extract_strided_slice %35 {offsets = [0, 192], sizes = [16, 32], strides = [1, 1]} : vector<16x384xf32> to vector<16x32xf32>
    %55 = vector.shape_cast %54 : vector<16x32xf32> to vector<2x8x32xf32>
    %56 = vector.extract_strided_slice %35 {offsets = [0, 224], sizes = [16, 32], strides = [1, 1]} : vector<16x384xf32> to vector<16x32xf32>
    %57 = vector.shape_cast %56 : vector<16x32xf32> to vector<2x8x32xf32>
    %58 = vector.shape_cast %51 : vector<2x8x32xf32> to vector<1x2x8x32xf32>
    %59 = vector.shape_cast %53 : vector<2x8x32xf32> to vector<1x2x8x32xf32>
    %60 = vector.shape_cast %55 : vector<2x8x32xf32> to vector<1x2x8x32xf32>
    %61 = vector.shape_cast %57 : vector<2x8x32xf32> to vector<1x2x8x32xf32>
    %62 = tpu.concatenate %58, %59, %60, %61 in 0 : vector<1x2x8x32xf32>, vector<1x2x8x32xf32>, vector<1x2x8x32xf32>, vector<1x2x8x32xf32> -> vector<4x2x8x32xf32>
    %63 = vector.shape_cast %62 : vector<4x2x8x32xf32> to vector<8x8x32xf32>
    %64 = vector.extract_strided_slice %35 {offsets = [0, 256], sizes = [16, 32], strides = [1, 1]} : vector<16x384xf32> to vector<16x32xf32>
    %65 = vector.shape_cast %64 : vector<16x32xf32> to vector<2x8x32xf32>
    %66 = vector.extract_strided_slice %35 {offsets = [0, 288], sizes = [16, 32], strides = [1, 1]} : vector<16x384xf32> to vector<16x32xf32>
    %67 = vector.shape_cast %66 : vector<16x32xf32> to vector<2x8x32xf32>
    %68 = vector.extract_strided_slice %35 {offsets = [0, 320], sizes = [16, 32], strides = [1, 1]} : vector<16x384xf32> to vector<16x32xf32>
    %69 = vector.shape_cast %68 : vector<16x32xf32> to vector<2x8x32xf32>
    %70 = vector.extract_strided_slice %35 {offsets = [0, 352], sizes = [16, 32], strides = [1, 1]} : vector<16x384xf32> to vector<16x32xf32>
    %71 = vector.shape_cast %70 : vector<16x32xf32> to vector<2x8x32xf32>
    %72 = vector.shape_cast %65 : vector<2x8x32xf32> to vector<1x2x8x32xf32>
    %73 = vector.shape_cast %67 : vector<2x8x32xf32> to vector<1x2x8x32xf32>
    %74 = vector.shape_cast %69 : vector<2x8x32xf32> to vector<1x2x8x32xf32>
    %75 = vector.shape_cast %71 : vector<2x8x32xf32> to vector<1x2x8x32xf32>
    %76 = tpu.concatenate %72, %73, %74, %75 in 0 : vector<1x2x8x32xf32>, vector<1x2x8x32xf32>, vector<1x2x8x32xf32>, vector<1x2x8x32xf32> -> vector<4x2x8x32xf32>
    %77 = vector.shape_cast %76 : vector<4x2x8x32xf32> to vector<8x8x32xf32>
    "tpu.trace_start"() <{level = 10 : i32, message = "gqd,gkd->gqk"}> : () -> ()
    %cst_20 = arith.constant dense<0.000000e+00> : vector<8x8x8xf32>
    %78 = tpu.matmul %49, %63, %cst_20 {dimension_numbers = #tpu.dot_dimension_numbers<[2], [2], [1], [1], [0, 0, 0, 1, 1, 1], [0], [0]>} : vector<8x8x32xf32>, vector<8x8x32xf32>, vector<8x8x8xf32> -> vector<8x8x8xf32>
    "tpu.trace_stop"() : () -> ()
    %cst_21 = arith.constant 0.176776692 : f32
    %79 = vector.broadcast %cst_21 : f32 to vector<8x8x8xf32>
    %80 = arith.mulf %78, %79 : vector<8x8x8xf32>
    %81 = vector.broadcast %7 : vector<8x1x8xf32> to vector<8x8x8xf32>
    %82 = arith.addf %80, %81 : vector<8x8x8xf32>
    %cst_22 = arith.constant dense<0xFF800000> : vector<8x8xf32>
    %83 = vector.multi_reduction <maximumf>, %82, %cst_22 [2] : vector<8x8x8xf32> to vector<8x8xf32>
    %84 = vector.shape_cast %83 : vector<8x8xf32> to vector<8x8x1xf32>
    %85 = vector.broadcast %84 : vector<8x8x1xf32> to vector<8x8x8xf32>
    %86 = arith.subf %82, %85 : vector<8x8x8xf32>
    %87 = math.exp %86 : vector<8x8x8xf32>
    %cst_23 = arith.constant dense<0.000000e+00> : vector<8x8xf32>
    %88 = vector.multi_reduction <add>, %87, %cst_23 [2] : vector<8x8x8xf32> to vector<8x8xf32>
    %89 = vector.shape_cast %88 : vector<8x8xf32> to vector<8x8x1xf32>
    %90 = tpu.reciprocal %89 {approx = true} : vector<8x8x1xf32> -> vector<8x8x1xf32>
    %91 = vector.broadcast %90 : vector<8x8x1xf32> to vector<8x8x8xf32>
    %92 = arith.mulf %87, %91 : vector<8x8x8xf32>
    %93 = arith.truncf %92 : vector<8x8x8xf32> to vector<8x8x8xbf16>
    %94 = arith.truncf %77 : vector<8x8x32xf32> to vector<8x8x32xbf16>
    "tpu.trace_start"() <{level = 10 : i32, message = "gqk,gkd->gqd"}> : () -> ()
    %cst_24 = arith.constant dense<0.000000e+00> : vector<8x8x32xf32>
    %95 = tpu.matmul %93, %94, %cst_24 {dimension_numbers = #tpu.dot_dimension_numbers<[2], [1], [1], [2], [0, 0, 0, 1, 1, 2], [0], [0]>} : vector<8x8x8xbf16>, vector<8x8x32xbf16>, vector<8x8x32xf32> -> vector<8x8x32xf32>
    "tpu.trace_stop"() : () -> ()
    %96 = vector.shape_cast %95 : vector<8x8x32xf32> to vector<4x16x32xf32>
    %97 = arith.truncf %96 : vector<4x16x32xf32> to vector<4x16x32xbf16>
    %c0_25 = arith.constant 0 : index
    %c0_26 = arith.constant 0 : index
    %c0_27 = arith.constant 0 : index
    %98 = vector.load %arg7[%c0_25, %c0_26, %c0_27] : memref<4x32x128xbf16, #tpu.memory_space<vmem>>, vector<4x32x128xbf16>
    "tpu.trace_start"() <{level = 10 : i32, message = "hnd,hdf->hnf"}> : () -> ()
    %cst_28 = arith.constant dense<0.000000e+00> : vector<4x16x128xf32>
    %99 = tpu.matmul %97, %98, %cst_28 {dimension_numbers = #tpu.dot_dimension_numbers<[2], [1], [1], [2], [0, 0, 0, 1, 1, 2], [0], [0]>} : vector<4x16x32xbf16>, vector<4x32x128xbf16>, vector<4x16x128xf32> -> vector<4x16x128xf32>
    "tpu.trace_stop"() : () -> ()
    %cst_29 = arith.constant dense<0.000000e+00> : vector<16x128xf32>
    %100 = vector.multi_reduction <add>, %99, %cst_29 [0] : vector<4x16x128xf32> to vector<16x128xf32>
    %c0_30 = arith.constant 0 : index
    %c0_31 = arith.constant 0 : index
    %101 = vector.load %arg8[%c0_30, %c0_31] : memref<1x128xf32, #tpu.memory_space<vmem>>, vector<1x128xf32>
    %102 = vector.broadcast %101 : vector<1x128xf32> to vector<16x128xf32>
    %103 = arith.addf %100, %102 : vector<16x128xf32>
    %104 = arith.addf %0, %103 : vector<16x128xf32>
    %c0_32 = arith.constant 0 : index
    %c0_33 = arith.constant 0 : index
    %105 = vector.load %arg9[%c0_32, %c0_33] : memref<1x128xf32, #tpu.memory_space<vmem>>, vector<1x128xf32>
    %c0_34 = arith.constant 0 : index
    %c0_35 = arith.constant 0 : index
    %106 = vector.load %arg10[%c0_34, %c0_35] : memref<1x128xf32, #tpu.memory_space<vmem>>, vector<1x128xf32>
    %cst_36 = arith.constant dense<0.000000e+00> : vector<16xf32>
    %107 = vector.multi_reduction <add>, %104, %cst_36 [1] : vector<16x128xf32> to vector<16xf32>
    %108 = vector.shape_cast %107 : vector<16xf32> to vector<16x1xf32>
    %cst_37 = arith.constant 1.280000e+02 : f32
    %109 = vector.broadcast %cst_37 : f32 to vector<16x1xf32>
    %110 = arith.divf %108, %109 : vector<16x1xf32>
    %111 = vector.broadcast %110 : vector<16x1xf32> to vector<16x128xf32>
    %112 = arith.subf %104, %111 : vector<16x128xf32>
    %113 = arith.mulf %112, %112 : vector<16x128xf32>
    %cst_38 = arith.constant dense<0.000000e+00> : vector<16xf32>
    %114 = vector.multi_reduction <add>, %113, %cst_38 [1] : vector<16x128xf32> to vector<16xf32>
    %115 = vector.shape_cast %114 : vector<16xf32> to vector<16x1xf32>
    %cst_39 = arith.constant 1.270000e+02 : f32
    %116 = vector.broadcast %cst_39 : f32 to vector<16x1xf32>
    %117 = arith.divf %115, %116 : vector<16x1xf32>
    %118 = math.sqrt %117 : vector<16x1xf32>
    %119 = vector.broadcast %105 : vector<1x128xf32> to vector<16x128xf32>
    %120 = arith.mulf %119, %112 : vector<16x128xf32>
    %cst_40 = arith.constant 9.99999997E-7 : f32
    %121 = vector.broadcast %cst_40 : f32 to vector<16x1xf32>
    %122 = arith.addf %118, %121 : vector<16x1xf32>
    %123 = vector.broadcast %122 : vector<16x1xf32> to vector<16x128xf32>
    %124 = arith.divf %120, %123 : vector<16x128xf32>
    %125 = vector.broadcast %106 : vector<1x128xf32> to vector<16x128xf32>
    %126 = arith.addf %124, %125 : vector<16x128xf32>
    %127 = arith.truncf %126 : vector<16x128xf32> to vector<16x128xbf16>
    %c0_41 = arith.constant 0 : index
    %c0_42 = arith.constant 0 : index
    %128 = vector.load %arg11[%c0_41, %c0_42] : memref<128x256xbf16, #tpu.memory_space<vmem>>, vector<128x256xbf16>
    %cst_43 = arith.constant dense<0.000000e+00> : vector<16x256xf32>
    %129 = tpu.matmul %127, %128, %cst_43 {dimension_numbers = #tpu.dot_dimension_numbers<[1], [0], [0], [1], [0, 0, 1, 1], [], []>} : vector<16x128xbf16>, vector<128x256xbf16>, vector<16x256xf32> -> vector<16x256xf32>
    %c0_44 = arith.constant 0 : index
    %c0_45 = arith.constant 0 : index
    %130 = vector.load %arg12[%c0_44, %c0_45] : memref<1x256xf32, #tpu.memory_space<vmem>>, vector<1x256xf32>
    %131 = vector.broadcast %130 : vector<1x256xf32> to vector<16x256xf32>
    %132 = arith.addf %129, %131 : vector<16x256xf32>
    %cst_46 = arith.constant 0.000000e+00 : f32
    %133 = vector.broadcast %cst_46 : f32 to vector<16x256xf32>
    %134 = arith.maximumf %132, %133 : vector<16x256xf32>
    %135 = arith.truncf %134 : vector<16x256xf32> to vector<16x256xbf16>
    %c0_47 = arith.constant 0 : index
    %c0_48 = arith.constant 0 : index
    %136 = vector.load %arg13[%c0_47, %c0_48] : memref<256x128xbf16, #tpu.memory_space<vmem>>, vector<256x128xbf16>
    %cst_49 = arith.constant dense<0.000000e+00> : vector<16x128xf32>
    %137 = tpu.matmul %135, %136, %cst_49 {dimension_numbers = #tpu.dot_dimension_numbers<[1], [0], [0], [1], [0, 0, 1, 1], [], []>} : vector<16x256xbf16>, vector<256x128xbf16>, vector<16x128xf32> -> vector<16x128xf32>
    %c0_50 = arith.constant 0 : index
    %c0_51 = arith.constant 0 : index
    %138 = vector.load %arg14[%c0_50, %c0_51] : memref<1x128xf32, #tpu.memory_space<vmem>>, vector<1x128xf32>
    %139 = vector.broadcast %138 : vector<1x128xf32> to vector<16x128xf32>
    %140 = arith.addf %137, %139 : vector<16x128xf32>
    %141 = arith.addf %104, %140 : vector<16x128xf32>
    %c0_52 = arith.constant 0 : index
    %c0_53 = arith.constant 0 : index
    %142 = vector.load %arg15[%c0_52, %c0_53] : memref<16x128xf32, #tpu.memory_space<vmem>>, vector<16x128xf32>
    tpu.vector_store %arg15[%c0_52, %c0_53], %141 {strides = array<i32>} : memref<16x128xf32, #tpu.memory_space<vmem>>, vector<16x128xf32>,
    return
  }
  func.func @transform_0(%arg0: i32) -> (i32, i32) {
    %c0_i32 = arith.constant 0 : i32
    %c0_i32_0 = arith.constant 0 : i32
    return %arg0, %c0_i32 : i32, i32
  }
  func.func @transform_1(%arg0: i32) -> (i32, i32, i32) {
    %c0_i32 = arith.constant 0 : i32
    %c0_i32_0 = arith.constant 0 : i32
    %c0_i32_1 = arith.constant 0 : i32
    return %arg0, %c0_i32, %c0_i32_0 : i32, i32, i32
  }
  func.func @transform_2(%arg0: i32) -> (i32, i32) {
    %c0_i32 = arith.constant 0 : i32
    %c0_i32_0 = arith.constant 0 : i32
    %c0_i32_1 = arith.constant 0 : i32
    return %c0_i32, %c0_i32_0 : i32, i32
  }
  func.func @transform_3(%arg0: i32) -> (i32, i32) {
    %c0_i32 = arith.constant 0 : i32
    %c0_i32_0 = arith.constant 0 : i32
    %c0_i32_1 = arith.constant 0 : i32
    return %c0_i32, %c0_i32_0 : i32, i32
  }
  func.func @transform_4(%arg0: i32) -> (i32, i32) {
    %c0_i32 = arith.constant 0 : i32
    %c0_i32_0 = arith.constant 0 : i32
    %c0_i32_1 = arith.constant 0 : i32
    return %c0_i32, %c0_i32_0 : i32, i32
  }
  func.func @transform_5(%arg0: i32) -> (i32, i32) {
    %c0_i32 = arith.constant 0 : i32
    %c0_i32_0 = arith.constant 0 : i32
    %c0_i32_1 = arith.constant 0 : i32
    return %c0_i32, %c0_i32_0 : i32, i32
  }
  func.func @transform_6(%arg0: i32) -> (i32, i32, i32) {
    %c0_i32 = arith.constant 0 : i32
    %c0_i32_0 = arith.constant 0 : i32
    %c0_i32_1 = arith.constant 0 : i32
    %c0_i32_2 = arith.constant 0 : i32
    return %c0_i32, %c0_i32_0, %c0_i32_1 : i32, i32, i32
  }
  func.func @transform_7(%arg0: i32) -> (i32, i32) {
    %c0_i32 = arith.constant 0 : i32
    %c0_i32_0 = arith.constant 0 : i32
    %c0_i32_1 = arith.constant 0 : i32
    return %c0_i32, %c0_i32_0 : i32, i32
  }
  func.func @transform_8(%arg0: i32) -> (i32, i32) {
    %c0_i32 = arith.constant 0 : i32
    %c0_i32_0 = arith.constant 0 : i32
    %c0_i32_1 = arith.constant 0 : i32
    return %c0_i32, %c0_i32_0 : i32, i32
  }
  func.func @transform_9(%arg0: i32) -> (i32, i32) {
    %c0_i32 = arith.constant 0 : i32
    %c0_i32_0 = arith.constant 0 : i32
    %c0_i32_1 = arith.constant 0 : i32
    return %c0_i32, %c0_i32_0 : i32, i32
  }
  func.func @transform_10(%arg0: i32) -> (i32, i32) {
    %c0_i32 = arith.constant 0 : i32
    %c0_i32_0 = arith.constant 0 : i32
    %c0_i32_1 = arith.constant 0 : i32
    return %c0_i32, %c0_i32_0 : i32, i32
  }
  func.func @transform_11(%arg0: i32) -> (i32, i32) {
    %c0_i32 = arith.constant 0 : i32
    %c0_i32_0 = arith.constant 0 : i32
    %c0_i32_1 = arith.constant 0 : i32
    return %c0_i32, %c0_i32_0 : i32, i32
  }
  func.func @transform_12(%arg0: i32) -> (i32, i32) {
    %c0_i32 = arith.constant 0 : i32
    %c0_i32_0 = arith.constant 0 : i32
    %c0_i32_1 = arith.constant 0 : i32
    return %c0_i32, %c0_i32_0 : i32, i32
  }
  func.func @transform_13(%arg0: i32) -> (i32, i32) {
    %c0_i32 = arith.constant 0 : i32
    %c0_i32_0 = arith.constant 0 : i32
    %c0_i32_1 = arith.constant 0 : i32
    return %c0_i32, %c0_i32_0 : i32, i32
  }
  func.func @transform_14(%arg0: i32) -> (i32, i32) {
    %c0_i32 = arith.constant 0 : i32
    %c0_i32_0 = arith.constant 0 : i32
    return %arg0, %c0_i32 : i32, i32
  }
}

</mosaic_0001>

<llo_original>
// kernel: tpu_custom_call.1
$region0: #{tpu_custom_call.1}
  #allocation0 [shape = 'u32[]', space=smem, size = 0x4, offset = 0x4, fixed_abs, tag = 'smem constant byte address 0x4 - core index']
  #allocation1 [shape = 'u32[144,128]{1,0:T(1,128)}', space=vmem, size = 0x12000, scoped, tag = 'internal scratch']
  %s0 = inlined_call_operand.hbm [shape: f32[32,128], index: 0, kind: input, shape index: {}]
  %s1 = inlined_call_operand.hbm [shape: f32[4,1,8], index: 1, kind: input, shape index: {}]
  %s2 = inlined_call_operand.hbm [shape: f32[1,128], index: 2, kind: input, shape index: {}]
  %s3 = inlined_call_operand.hbm [shape: f32[1,128], index: 3, kind: input, shape index: {}]
  %s4 = inlined_call_operand.hbm [shape: bf16[128,384], index: 4, kind: input, shape index: {}]
  %s5 = inlined_call_operand.vmem [shape: f32[1,384], index: 5, kind: input, shape index: {}]
  %s6 = inlined_call_operand.hbm [shape: bf16[4,32,128], index: 6, kind: input, shape index: {}]
  %s7 = inlined_call_operand.vmem [shape: f32[1,128], index: 7, kind: input, shape index: {}]
  %s8 = inlined_call_operand.vmem [shape: f32[1,128], index: 8, kind: input, shape index: {}]
  %s9 = inlined_call_operand.vmem [shape: f32[1,128], index: 9, kind: input, shape index: {}]
  %s10 = inlined_call_operand.hbm [shape: bf16[128,256], index: 10, kind: input, shape index: {}]
  %s11 = inlined_call_operand.vmem [shape: f32[1,256], index: 11, kind: input, shape index: {}]
  %s12 = inlined_call_operand.hbm [shape: bf16[256,128], index: 12, kind: input, shape index: {}]
  %s13 = inlined_call_operand.vmem [shape: f32[1,128], index: 13, kind: input, shape index: {}]
  %s14 = inlined_call_operand.hbm [shape: f32[32,128], index: 14, kind: output, shape index: {}]
  %s15 = sld [smem:[#allocation0]]
  $region121: #{tpu_custom_call.1} parent=0
    _
  %s17 = ssub.s32 1, %s15
  %s18 = scalar_select 0, %s17, %s15
  $region1: #{tpu_custom_call.1} parent=0
    #allocation2 [shape = 'u8[16384]{0}', space=vmem, size = 0x4000, scoped, tag = 'input window, operand 0']
    #allocation3 [shape = 's32[2]{0}', space=sflag, size = 0x8, scoped, tag = 'scoped memory for tpu_custom_call.1']
    #allocation4 [shape = 's32[2]{0}', space=sflag, size = 0x8, scoped, tag = 'scoped memory for tpu_custom_call.1']
    #allocation5 [shape = 'u8[2048]{0}', space=vmem, size = 0x800, scoped, tag = 'input window, operand 1']
    #allocation6 [shape = 's32[2]{0}', space=sflag, size = 0x8, scoped, tag = 'scoped memory for tpu_custom_call.1']
    #allocation7 [shape = 'u8[512]{0}', space=vmem, size = 0x400, scoped, tag = 'input window, operand 2, single buffered']
    #allocation8 [shape = 'u8[512]{0}', space=vmem, size = 0x400, scoped, tag = 'input window, operand 3, single buffered']
    #allocation9 [shape = 's32[1]{0}', space=sflag, size = 0x4, scoped, tag = 'scoped memory for tpu_custom_call.1']
    #allocation10 [shape = 'u8[98304]{0}', space=vmem, size = 0x18000, scoped, tag = 'input window, operand 4, single buffered']
    #allocation11 [shape = 'u8[32768]{0}', space=vmem, size = 0x8000, scoped, tag = 'input window, operand 6, single buffered']
    #allocation12 [shape = 's32[1]{0}', space=sflag, size = 0x4, scoped, tag = 'scoped memory for tpu_custom_call.1']
    #allocation13 [shape = 'u8[65536]{0}', space=vmem, size = 0x10000, scoped, tag = 'input window, operand 10, single buffered']
    #allocation14 [shape = 'u8[65536]{0}', space=vmem, size = 0x10000, scoped, tag = 'input window, operand 12, single buffered']
    #allocation15 [shape = 's32[1]{0}', space=sflag, size = 0x4, scoped, tag = 'scoped memory for tpu_custom_call.1']
    #allocation16 [shape = 'u8[16384]{0}', space=vmem, size = 0x4000, scoped, tag = 'output window, operand 0']
    %19 = vsyncpa [#allocation3], 0
    %s20 = scalar_lea.sflag [#allocation3], 1
    %21 = vsyncpa %s20, 0
    %22 = vsyncpa [#allocation6], 0
    %s23 = scalar_lea.sflag [#allocation6], 1
    %24 = vsyncpa %s23, 0
    %25 = vsyncpa [#allocation9], 0
    %26 = vsyncpa [#allocation12], 0
    %27 = vsyncpa [#allocation15], 0
    %28 = vsyncpa [#allocation4], 0
    %s29 = scalar_lea.sflag [#allocation4], 1
    %30 = vsyncpa %s29, 0
    loop: start=0, step=1, limit=4
    $region2: #{tpu_custom_call.1} parent=1 // loop_pre_header
      _
    $region3: #{tpu_custom_call.1} parent=1 // loop_header
      %s32 = sphi 0, %s36
      %p33 = scmp.ge.s32.totalorder %s32, 4
      %s42 = sphi 0, %s44
      %s45 = sphi 0, %s42
      %s46 = sphi 0, %s45
      %s62 = sphi 0, %s46
      %s68 = sphi 0, %s70
      %s71 = sphi 0, %s68
      %s72 = sphi 0, %s71
      %s88 = sphi 0, %s72
      %s92 = sphi 0, %s92
      %s94 = sphi 0, %s92
      %s95 = sphi 0, %s94
      %s109 = sphi 0, %s95
      %s113 = sphi 0, %s113
      %s115 = sphi 0, %s113
      %s116 = sphi 0, %s115
      %s130 = sphi 0, %s116
      %s134 = sphi 0, %s134
      %s136 = sphi 0, %s134
      %s137 = sphi 0, %s136
      %s151 = sphi 0, %s137
      %s155 = sphi 0, %s155
      %s157 = sphi 0, %s155
      %s158 = sphi 0, %s157
      %s172 = sphi 0, %s158
      %s176 = sphi 0, %s176
      %s178 = sphi 0, %s176
      %s179 = sphi 0, %s178
      %s193 = sphi 0, %s179
      %s197 = sphi 0, %s197
      %s199 = sphi 0, %s197
      %s200 = sphi 0, %s199
      %s214 = sphi 0, %s200
      %s218 = sphi 0, %s218
      %s220 = sphi 0, %s218
      %s221 = sphi 0, %s220
      %s235 = sphi 0, %s221
      %s239 = sphi 0, %s239
      %s241 = sphi 0, %s239
      %s242 = sphi 0, %s241
      %s256 = sphi 0, %s242
      %s260 = sphi 0, %s260
      %s262 = sphi 0, %s260
      %s263 = sphi 0, %s262
      %s277 = sphi 0, %s263
      %s281 = sphi 0, %s281
      %s283 = sphi 0, %s281
      %s284 = sphi 0, %s283
      %s298 = sphi 0, %s284
      %s302 = sphi 0, %s302
      %s304 = sphi 0, %s302
      %s305 = sphi 0, %s304
      %s319 = sphi 0, %s305
      %s323 = sphi 0, %s323
      %s325 = sphi 0, %s323
      %s326 = sphi 0, %s325
      %s340 = sphi 0, %s326
      %s346 = sphi 0, %s348
      %s349 = sphi 0, %s346
      %s350 = sphi 0, %s349
      %s366 = sphi 0, %s350
    $region4: #{tpu_custom_call.1} parent=1 // loop_header_branch
      %35 = sbr.rel (%p33) target = $region8
    $region5: #{tpu_custom_call.1} parent=1 // loop_body
      %s37 = ssub.s32 %s32, 1
      %s38 = ssub.s32 %s32, 2
      %s39 = sadd.s32 %s32, 1
      %s40 = ssub.s32 %s32, %s39
      %p41 = scmp.eq.s32.totalorder %s40, 0
      %s43 = sadd.s32 %s42, 1
      %s44 = scalar_select %p41, %s42, %s43
      %p47 = pneg %p41
      %p48 = scmp.eq.s32.totalorder %s32, 1
      %p49 = por %p47, %p48
      %p50 = scmp.ne.s32.totalorder %s42, %s45
      %p51 = scmp.eq.s32.totalorder %s32, 0
      %p52 = por %p50, %p51
      %p53 = scmp.ne.s32.totalorder %s42, %s45
      %p54 = scmp.eq.s32.totalorder %s37, 1
      %p55 = por %p53, %p54
      %p56 = scmp.ne.s32.totalorder %s45, %s46
      %p57 = scmp.eq.s32.totalorder %s37, 0
      %p58 = por %p56, %p57
      %p59 = scmp.ne.s32.totalorder %s45, %s46
      %p60 = scmp.eq.s32.totalorder %s38, 1
      %p61 = por %p59, %p60
      %p63 = scmp.ne.s32.totalorder %s46, %s62
      %p64 = scmp.eq.s32.totalorder %s38, 0
      %p65 = por %p63, %p64
      %s66 = ssub.s32 %s32, %s39
      %p67 = scmp.eq.s32.totalorder %s66, 0
      %s69 = sadd.s32 %s68, 1
      %s70 = scalar_select %p67, %s68, %s69
      %p73 = pneg %p67
      %p74 = scmp.eq.s32.totalorder %s32, 1
      %p75 = por %p73, %p74
      %p76 = scmp.ne.s32.totalorder %s68, %s71
      %p77 = scmp.eq.s32.totalorder %s32, 0
      %p78 = por %p76, %p77
      %p79 = scmp.ne.s32.totalorder %s68, %s71
      %p80 = scmp.eq.s32.totalorder %s37, 1
      %p81 = por %p79, %p80
      %p82 = scmp.ne.s32.totalorder %s71, %s72
      %p83 = scmp.eq.s32.totalorder %s37, 0
      %p84 = por %p82, %p83
      %p85 = scmp.ne.s32.totalorder %s71, %s72
      %p86 = scmp.eq.s32.totalorder %s38, 1
      %p87 = por %p85, %p86
      %p89 = scmp.ne.s32.totalorder %s72, %s88
      %p90 = scmp.eq.s32.totalorder %s38, 0
      %p91 = por %p89, %p90
      %s93 = sadd.s32 %s92, 1
      %p96 = scmp.eq.s32.totalorder %s32, 1
      %p97 = scmp.ne.s32.totalorder %s92, %s94
      %p98 = scmp.eq.s32.totalorder %s32, 0
      %p99 = por %p97, %p98
      %p100 = scmp.ne.s32.totalorder %s92, %s94
      %p101 = scmp.eq.s32.totalorder %s37, 1
      %p102 = por %p100, %p101
      %p103 = scmp.ne.s32.totalorder %s94, %s95
      %p104 = scmp.eq.s32.totalorder %s37, 0
      %p105 = por %p103, %p104
      %p106 = scmp.ne.s32.totalorder %s94, %s95
      %p107 = scmp.eq.s32.totalorder %s38, 1
      %p108 = por %p106, %p107
      %p110 = scmp.ne.s32.totalorder %s95, %s109
      %p111 = scmp.eq.s32.totalorder %s38, 0
      %p112 = por %p110, %p111
      %s114 = sadd.s32 %s113, 1
      %p117 = scmp.eq.s32.totalorder %s32, 1
      %p118 = scmp.ne.s32.totalorder %s113, %s115
      %p119 = scmp.eq.s32.totalorder %s32, 0
      %p120 = por %p118, %p119
      %p121 = scmp.ne.s32.totalorder %s113, %s115
      %p122 = scmp.eq.s32.totalorder %s37, 1
      %p123 = por %p121, %p122
      %p124 = scmp.ne.s32.totalorder %s115, %s116
      %p125 = scmp.eq.s32.totalorder %s37, 0
      %p126 = por %p124, %p125
      %p127 = scmp.ne.s32.totalorder %s115, %s116
      %p128 = scmp.eq.s32.totalorder %s38, 1
      %p129 = por %p127, %p128
      %p131 = scmp.ne.s32.totalorder %s116, %s130
      %p132 = scmp.eq.s32.totalorder %s38, 0
      %p133 = por %p131, %p132
      %s135 = sadd.s32 %s134, 1
      %p138 = scmp.eq.s32.totalorder %s32, 1
      %p139 = scmp.ne.s32.totalorder %s134, %s136
      %p140 = scmp.eq.s32.totalorder %s32, 0
      %p141 = por %p139, %p140
      %p142 = scmp.ne.s32.totalorder %s134, %s136
      %p143 = scmp.eq.s32.totalorder %s37, 1
      %p144 = por %p142, %p143
      %p145 = scmp.ne.s32.totalorder %s136, %s137
      %p146 = scmp.eq.s32.totalorder %s37, 0
      %p147 = por %p145, %p146
      %p148 = scmp.ne.s32.totalorder %s136, %s137
      %p149 = scmp.eq.s32.totalorder %s38, 1
      %p150 = por %p148, %p149
      %p152 = scmp.ne.s32.totalorder %s137, %s151
      %p153 = scmp.eq.s32.totalorder %s38, 0
      %p154 = por %p152, %p153
      %s156 = sadd.s32 %s155, 1
      %p159 = scmp.eq.s32.totalorder %s32, 1
      %p160 = scmp.ne.s32.totalorder %s155, %s157
      %p161 = scmp.eq.s32.totalorder %s32, 0
      %p162 = por %p160, %p161
      %p163 = scmp.ne.s32.totalorder %s155, %s157
      %p164 = scmp.eq.s32.totalorder %s37, 1
      %p165 = por %p163, %p164
      %p166 = scmp.ne.s32.totalorder %s157, %s158
      %p167 = scmp.eq.s32.totalorder %s37, 0
      %p168 = por %p166, %p167
      %p169 = scmp.ne.s32.totalorder %s157, %s158
      %p170 = scmp.eq.s32.totalorder %s38, 1
      %p171 = por %p169, %p170
      %p173 = scmp.ne.s32.totalorder %s158, %s172
      %p174 = scmp.eq.s32.totalorder %s38, 0
      %p175 = por %p173, %p174
      %s177 = sadd.s32 %s176, 1
      %p180 = scmp.eq.s32.totalorder %s32, 1
      %p181 = scmp.ne.s32.totalorder %s176, %s178
      %p182 = scmp.eq.s32.totalorder %s32, 0
      %p183 = por %p181, %p182
      %p184 = scmp.ne.s32.totalorder %s176, %s178
      %p185 = scmp.eq.s32.totalorder %s37, 1
      %p186 = por %p184, %p185
      %p187 = scmp.ne.s32.totalorder %s178, %s179
      %p188 = scmp.eq.s32.totalorder %s37, 0
      %p189 = por %p187, %p188
      %p190 = scmp.ne.s32.totalorder %s178, %s179
      %p191 = scmp.eq.s32.totalorder %s38, 1
      %p192 = por %p190, %p191
      %p194 = scmp.ne.s32.totalorder %s179, %s193
      %p195 = scmp.eq.s32.totalorder %s38, 0
      %p196 = por %p194, %p195
      %s198 = sadd.s32 %s197, 1
      %p201 = scmp.eq.s32.totalorder %s32, 1
      %p202 = scmp.ne.s32.totalorder %s197, %s199
      %p203 = scmp.eq.s32.totalorder %s32, 0
      %p204 = por %p202, %p203
      %p205 = scmp.ne.s32.totalorder %s197, %s199
      %p206 = scmp.eq.s32.totalorder %s37, 1
      %p207 = por %p205, %p206
      %p208 = scmp.ne.s32.totalorder %s199, %s200
      %p209 = scmp.eq.s32.totalorder %s37, 0
      %p210 = por %p208, %p209
      %p211 = scmp.ne.s32.totalorder %s199, %s200
      %p212 = scmp.eq.s32.totalorder %s38, 1
      %p213 = por %p211, %p212
      %p215 = scmp.ne.s32.totalorder %s200, %s214
      %p216 = scmp.eq.s32.totalorder %s38, 0
      %p217 = por %p215, %p216
      %s219 = sadd.s32 %s218, 1
      %p222 = scmp.eq.s32.totalorder %s32, 1
      %p223 = scmp.ne.s32.totalorder %s218, %s220
      %p224 = scmp.eq.s32.totalorder %s32, 0
      %p225 = por %p223, %p224
      %p226 = scmp.ne.s32.totalorder %s218, %s220
      %p227 = scmp.eq.s32.totalorder %s37, 1
      %p228 = por %p226, %p227
      %p229 = scmp.ne.s32.totalorder %s220, %s221
      %p230 = scmp.eq.s32.totalorder %s37, 0
      %p231 = por %p229, %p230
      %p232 = scmp.ne.s32.totalorder %s220, %s221
      %p233 = scmp.eq.s32.totalorder %s38, 1
      %p234 = por %p232, %p233
      %p236 = scmp.ne.s32.totalorder %s221, %s235
      %p237 = scmp.eq.s32.totalorder %s38, 0
      %p238 = por %p236, %p237
      %s240 = sadd.s32 %s239, 1
      %p243 = scmp.eq.s32.totalorder %s32, 1
      %p244 = scmp.ne.s32.totalorder %s239, %s241
      %p245 = scmp.eq.s32.totalorder %s32, 0
      %p246 = por %p244, %p245
      %p247 = scmp.ne.s32.totalorder %s239, %s241
      %p248 = scmp.eq.s32.totalorder %s37, 1
      %p249 = por %p247, %p248
      %p250 = scmp.ne.s32.totalorder %s241, %s242
      %p251 = scmp.eq.s32.totalorder %s37, 0
      %p252 = por %p250, %p251
      %p253 = scmp.ne.s32.totalorder %s241, %s242
      %p254 = scmp.eq.s32.totalorder %s38, 1
      %p255 = por %p253, %p254
      %p257 = scmp.ne.s32.totalorder %s242, %s256
      %p258 = scmp.eq.s32.totalorder %s38, 0
      %p259 = por %p257, %p258
      %s261 = sadd.s32 %s260, 1
      %p264 = scmp.eq.s32.totalorder %s32, 1
      %p265 = scmp.ne.s32.totalorder %s260, %s262
      %p266 = scmp.eq.s32.totalorder %s32, 0
      %p267 = por %p265, %p266
      %p268 = scmp.ne.s32.totalorder %s260, %s262
      %p269 = scmp.eq.s32.totalorder %s37, 1
      %p270 = por %p268, %p269
      %p271 = scmp.ne.s32.totalorder %s262, %s263
      %p272 = scmp.eq.s32.totalorder %s37, 0
      %p273 = por %p271, %p272
      %p274 = scmp.ne.s32.totalorder %s262, %s263
      %p275 = scmp.eq.s32.totalorder %s38, 1
      %p276 = por %p274, %p275
      %p278 = scmp.ne.s32.totalorder %s263, %s277
      %p279 = scmp.eq.s32.totalorder %s38, 0
      %p280 = por %p278, %p279
      %s282 = sadd.s32 %s281, 1
      %p285 = scmp.eq.s32.totalorder %s32, 1
      %p286 = scmp.ne.s32.totalorder %s281, %s283
      %p287 = scmp.eq.s32.totalorder %s32, 0
      %p288 = por %p286, %p287
      %p289 = scmp.ne.s32.totalorder %s281, %s283
      %p290 = scmp.eq.s32.totalorder %s37, 1
      %p291 = por %p289, %p290
      %p292 = scmp.ne.s32.totalorder %s283, %s284
      %p293 = scmp.eq.s32.totalorder %s37, 0
      %p294 = por %p292, %p293
      %p295 = scmp.ne.s32.totalorder %s283, %s284
      %p296 = scmp.eq.s32.totalorder %s38, 1
      %p297 = por %p295, %p296
      %p299 = scmp.ne.s32.totalorder %s284, %s298
      %p300 = scmp.eq.s32.totalorder %s38, 0
      %p301 = por %p299, %p300
      %s303 = sadd.s32 %s302, 1
      %p306 = scmp.eq.s32.totalorder %s32, 1
      %p307 = scmp.ne.s32.totalorder %s302, %s304
      %p308 = scmp.eq.s32.totalorder %s32, 0
      %p309 = por %p307, %p308
      %p310 = scmp.ne.s32.totalorder %s302, %s304
      %p311 = scmp.eq.s32.totalorder %s37, 1
      %p312 = por %p310, %p311
      %p313 = scmp.ne.s32.totalorder %s304, %s305
      %p314 = scmp.eq.s32.totalorder %s37, 0
      %p315 = por %p313, %p314
      %p316 = scmp.ne.s32.totalorder %s304, %s305
      %p317 = scmp.eq.s32.totalorder %s38, 1
      %p318 = por %p316, %p317
      %p320 = scmp.ne.s32.totalorder %s305, %s319
      %p321 = scmp.eq.s32.totalorder %s38, 0
      %p322 = por %p320, %p321
      %s324 = sadd.s32 %s323, 1
      %p327 = scmp.eq.s32.totalorder %s32, 1
      %p328 = scmp.ne.s32.totalorder %s323, %s325
      %p329 = scmp.eq.s32.totalorder %s32, 0
      %p330 = por %p328, %p329
      %p331 = scmp.ne.s32.totalorder %s323, %s325
      %p332 = scmp.eq.s32.totalorder %s37, 1
      %p333 = por %p331, %p332
      %p334 = scmp.ne.s32.totalorder %s325, %s326
      %p335 = scmp.eq.s32.totalorder %s37, 0
      %p336 = por %p334, %p335
      %p337 = scmp.ne.s32.totalorder %s325, %s326
      %p338 = scmp.eq.s32.totalorder %s38, 1
      %p339 = por %p337, %p338
      %p341 = scmp.ne.s32.totalorder %s326, %s340
      %p342 = scmp.eq.s32.totalorder %s38, 0
      %p343 = por %p341, %p342
      %s344 = ssub.s32 %s32, %s39
      %p345 = scmp.eq.s32.totalorder %s344, 0
      %s347 = sadd.s32 %s346, 1
      %s348 = scalar_select %p345, %s346, %s347
      %p351 = pneg %p345
      %p352 = scmp.eq.s32.totalorder %s32, 1
      %p353 = por %p351, %p352
      %p354 = scmp.ne.s32.totalorder %s346, %s349
      %p355 = scmp.eq.s32.totalorder %s32, 0
      %p356 = por %p354, %p355
      %p357 = scmp.ne.s32.totalorder %s346, %s349
      %p358 = scmp.eq.s32.totalorder %s37, 1
      %p359 = por %p357, %p358
      %p360 = scmp.ne.s32.totalorder %s349, %s350
      %p361 = scmp.eq.s32.totalorder %s37, 0
      %p362 = por %p360, %p361
      %p363 = scmp.ne.s32.totalorder %s349, %s350
      %p364 = scmp.eq.s32.totalorder %s38, 1
      %p365 = por %p363, %p364
      %p367 = scmp.ne.s32.totalorder %s350, %s366
      %p368 = scmp.eq.s32.totalorder %s38, 0
      %p369 = por %p367, %p368
      %p370 = scmp.le.s32.totalorder 1, %s32
      %p371 = scmp.lt.s32.totalorder %s32, 3
      %p372 = pnand %p370, %p371
      %p373 = pneg %p372
      // Predicated region
      $region9: #{tpu_custom_call.1} parent=5 // pred_check
        _
      $region10: #{tpu_custom_call.1} parent=5 // pred_check_branch
        %375 = sbr.rel (%p372) target = $region12
      $region11: #{tpu_custom_call.1} parent=5 // pred_region
        %s376 = ssub.s32 %s32, 1
        // Predicated region
        $region13: #{tpu_custom_call.1} parent=11 // pred_check
          %p377 = pneg %p105
        $region14: #{tpu_custom_call.1} parent=11 // pred_check_branch
          %379 = sbr.rel (%p377) target = $region16
        $region15: #{tpu_custom_call.1} parent=11 // pred_region
          %s381 = ssub.s32 16, 16
          %382 = vsyncadd [#allocation6], %s381
          %s384 = sshll.u32 [#allocation7], 4
          %s385 = int_to_ptr.vmem [resolvable:$true] %s384
          %387 = dma.hbm_to_vmem [thread:$0]  %s2, 16, %s385, [#allocation6]
        $region16: #{tpu_custom_call.1} parent=11 // pred_fallthru
          _
        // Predicated region
        $region17: #{tpu_custom_call.1} parent=11 // pred_check
          %p388 = pneg %p126
        $region18: #{tpu_custom_call.1} parent=11 // pred_check_branch
          %390 = sbr.rel (%p388) target = $region20
        $region19: #{tpu_custom_call.1} parent=11 // pred_region
          %s392 = ssub.s32 16, 16
          %393 = vsyncadd [#allocation9], %s392
          %s395 = sshll.u32 [#allocation8], 4
          %s396 = int_to_ptr.vmem [resolvable:$true] %s395
          %398 = dma.hbm_to_vmem [thread:$0]  %s3, 16, %s396, [#allocation9]
        $region20: #{tpu_custom_call.1} parent=11 // pred_fallthru
          _
        // Predicated region
        $region21: #{tpu_custom_call.1} parent=11 // pred_check
          %p399 = pneg %p147
        $region22: #{tpu_custom_call.1} parent=11 // pred_check_branch
          %401 = sbr.rel (%p399) target = $region24
        $region23: #{tpu_custom_call.1} parent=11 // pred_region
          %s403 = ssub.s32 3072, 3072
          %404 = vsyncadd [#allocation9], %s403
          %s405 = sshll.u32 [#allocation10], 4
          %s406 = int_to_ptr.vmem [resolvable:$true] %s405
          %411 = dma.hbm_to_vmem [thread:$0]  %s4, 3072, %s406, [#allocation9], 192, 192, 12
        $region24: #{tpu_custom_call.1} parent=11 // pred_fallthru
          _
        // Predicated region
        $region25: #{tpu_custom_call.1} parent=11 // pred_check
          %p412 = pneg %p168
        $region26: #{tpu_custom_call.1} parent=11 // pred_check_branch
          %414 = sbr.rel (%p412) target = $region28
        $region27: #{tpu_custom_call.1} parent=11 // pred_region
          _
        $region28: #{tpu_custom_call.1} parent=11 // pred_fallthru
          _
        // Predicated region
        $region29: #{tpu_custom_call.1} parent=11 // pred_check
          %p415 = pneg %p189
        $region30: #{tpu_custom_call.1} parent=11 // pred_check_branch
          %417 = sbr.rel (%p415) target = $region32
        $region31: #{tpu_custom_call.1} parent=11 // pred_region
          %s419 = ssub.s32 1024, 1024
          %420 = vsyncadd [#allocation12], %s419
          %s421 = sshll.u32 [#allocation11], 4
          %s422 = int_to_ptr.vmem [resolvable:$true] %s421
          %427 = dma.hbm_to_vmem [thread:$0]  %s6, 1024, %s422, [#allocation12], 64, 64, 4
        $region32: #{tpu_custom_call.1} parent=11 // pred_fallthru
          _
        // Predicated region
        $region33: #{tpu_custom_call.1} parent=11 // pred_check
          %p428 = pneg %p210
        $region34: #{tpu_custom_call.1} parent=11 // pred_check_branch
          %430 = sbr.rel (%p428) target = $region36
        $region35: #{tpu_custom_call.1} parent=11 // pred_region
          _
        $region36: #{tpu_custom_call.1} parent=11 // pred_fallthru
          _
        // Predicated region
        $region37: #{tpu_custom_call.1} parent=11 // pred_check
          %p431 = pneg %p231
        $region38: #{tpu_custom_call.1} parent=11 // pred_check_branch
          %433 = sbr.rel (%p431) target = $region40
        $region39: #{tpu_custom_call.1} parent=11 // pred_region
          _
        $region40: #{tpu_custom_call.1} parent=11 // pred_fallthru
          _
        // Predicated region
        $region41: #{tpu_custom_call.1} parent=11 // pred_check
          %p434 = pneg %p252
        $region42: #{tpu_custom_call.1} parent=11 // pred_check_branch
          %436 = sbr.rel (%p434) target = $region44
        $region43: #{tpu_custom_call.1} parent=11 // pred_region
          _
        $region44: #{tpu_custom_call.1} parent=11 // pred_fallthru
          _
        // Predicated region
        $region45: #{tpu_custom_call.1} parent=11 // pred_check
          %p437 = pneg %p273
        $region46: #{tpu_custom_call.1} parent=11 // pred_check_branch
          %439 = sbr.rel (%p437) target = $region48
        $region47: #{tpu_custom_call.1} parent=11 // pred_region
          %s441 = ssub.s32 2048, 2048
          %442 = vsyncadd [#allocation12], %s441
          %s443 = sshll.u32 [#allocation13], 4
          %s444 = int_to_ptr.vmem [resolvable:$true] %s443
          %449 = dma.hbm_to_vmem [thread:$0]  %s10, 2048, %s444, [#allocation12], 128, 128, 8
        $region48: #{tpu_custom_call.1} parent=11 // pred_fallthru
          _
        // Predicated region
        $region49: #{tpu_custom_call.1} parent=11 // pred_check
          %p450 = pneg %p294
        $region50: #{tpu_custom_call.1} parent=11 // pred_check_branch
          %452 = sbr.rel (%p450) target = $region52
        $region51: #{tpu_custom_call.1} parent=11 // pred_region
          _
        $region52: #{tpu_custom_call.1} parent=11 // pred_fallthru
          _
        // Predicated region
        $region53: #{tpu_custom_call.1} parent=11 // pred_check
          %p453 = pneg %p315
        $region54: #{tpu_custom_call.1} parent=11 // pred_check_branch
          %455 = sbr.rel (%p453) target = $region56
        $region55: #{tpu_custom_call.1} parent=11 // pred_region
          %s457 = ssub.s32 2048, 2048
          %458 = vsyncadd [#allocation15], %s457
          %s459 = sshll.u32 [#allocation14], 4
          %s460 = int_to_ptr.vmem [resolvable:$true] %s459
          %465 = dma.hbm_to_vmem [thread:$0]  %s12, 2048, %s460, [#allocation15], 64, 64, 4
        $region56: #{tpu_custom_call.1} parent=11 // pred_fallthru
          _
        // Predicated region
        $region57: #{tpu_custom_call.1} parent=11 // pred_check
          %p466 = pneg %p336
        $region58: #{tpu_custom_call.1} parent=11 // pred_check_branch
          %468 = sbr.rel (%p466) target = $region60
        $region59: #{tpu_custom_call.1} parent=11 // pred_region
          _
        $region60: #{tpu_custom_call.1} parent=11 // pred_fallthru
          _
      $region12: #{tpu_custom_call.1} parent=5 // pred_fallthru
        _
      %p469 = scmp.lt.s32.totalorder %s32, 2
      // Predicated region
      $region61: #{tpu_custom_call.1} parent=5 // pred_check
        %p470 = pneg %p469
      $region62: #{tpu_custom_call.1} parent=5 // pred_check_branch
        %472 = sbr.rel (%p470) target = $region64
      $region63: #{tpu_custom_call.1} parent=5 // pred_region
        // Predicated region
        $region65: #{tpu_custom_call.1} parent=63 // pred_check
          %p473 = pneg %p52
        $region66: #{tpu_custom_call.1} parent=63 // pred_check_branch
          %475 = sbr.rel (%p473) target = $region68
        $region67: #{tpu_custom_call.1} parent=63 // pred_region
          %s476 = sand.u32 %s42, 1
          %s477 = scalar_lea.sflag [#allocation3], %s476
          %s478 = sand.u32 %s42, 1
          %s479 = smul.addr %s478, 16
          %s480 = scalar_lea.vmem [#allocation2], %s479
          %s481 = smul.u32 2, %s32
          %s483 = ssub.s32 256, 256
          %484 = vsyncadd %s477, %s483
          %s485 = smul.addr %s481, 128
          %s486 = scalar_lea.hbm %s0, %s485
          %s487 = sshll.u32 %s480, 4
          %s488 = int_to_ptr.vmem [resolvable:$true] %s487
          %493 = dma.hbm_to_vmem [thread:$0]  %s486, 256, %s488, %s477, 128, 128, 8
        $region68: #{tpu_custom_call.1} parent=63 // pred_fallthru
          _
        // Predicated region
        $region69: #{tpu_custom_call.1} parent=63 // pred_check
          %p494 = pneg %p78
        $region70: #{tpu_custom_call.1} parent=63 // pred_check_branch
          %496 = sbr.rel (%p494) target = $region72
        $region71: #{tpu_custom_call.1} parent=63 // pred_region
          %s497 = sand.u32 %s32, 1
          %s498 = scalar_lea.sflag [#allocation6], %s497
          %s499 = sand.u32 %s68, 1
          %s500 = smul.addr %s499, 2
          %s501 = scalar_lea.vmem [#allocation5], %s500
          %s502 = smul.u32 2, %s32
          %s504 = ssub.s32 32, 32
          %505 = vsyncadd %s498, %s504
          %s506 = smul.addr %s502, 16
          %s507 = scalar_lea.hbm %s1, %s506
          %s508 = sshll.u32 %s501, 4
          %s509 = int_to_ptr.vmem [resolvable:$true] %s508
          %514 = dma.hbm_to_vmem [thread:$0]  %s507, 32, %s509, %s498, 16, 16, 1
        $region72: #{tpu_custom_call.1} parent=63 // pred_fallthru
          _
      $region64: #{tpu_custom_call.1} parent=5 // pred_fallthru
        _
      %p515 = scmp.le.s32.totalorder 1, %s32
      %p516 = scmp.lt.s32.totalorder %s32, 3
      %p517 = pnand %p515, %p516
      %p518 = pneg %p517
      // Predicated region
      $region73: #{tpu_custom_call.1} parent=5 // pred_check
        _
      $region74: #{tpu_custom_call.1} parent=5 // pred_check_branch
        %520 = sbr.rel (%p517) target = $region76
      $region75: #{tpu_custom_call.1} parent=5 // pred_region
        %s521 = ssub.s32 %s32, 1
        %s522 = sand.u32 %s45, 1
        %s523 = scalar_lea.sflag [#allocation3], %s522
        %s524 = sand.u32 %s45, 1
        %s525 = smul.addr %s524, 16
        %s526 = scalar_lea.vmem [#allocation2], %s525
        // Predicated region
        $region77: #{tpu_custom_call.1} parent=75 // pred_check
          %p527 = pneg %p58
        $region78: #{tpu_custom_call.1} parent=75 // pred_check_branch
          %529 = sbr.rel (%p527) target = $region80
        $region79: #{tpu_custom_call.1} parent=75 // pred_region
          %530 = dma.done %s523, 256
        $region80: #{tpu_custom_call.1} parent=75 // pred_fallthru
          _
        %s531 = sand.u32 %s37, 1
        %s532 = scalar_lea.sflag [#allocation6], %s531
        %s533 = sand.u32 %s71, 1
        %s534 = smul.addr %s533, 2
        %s535 = scalar_lea.vmem [#allocation5], %s534
        // Predicated region
        $region81: #{tpu_custom_call.1} parent=75 // pred_check
          %p536 = pneg %p84
        $region82: #{tpu_custom_call.1} parent=75 // pred_check_branch
          %538 = sbr.rel (%p536) target = $region84
        $region83: #{tpu_custom_call.1} parent=75 // pred_region
          %539 = dma.done %s532, 32
        $region84: #{tpu_custom_call.1} parent=75 // pred_fallthru
          _
        // Predicated region
        $region85: #{tpu_custom_call.1} parent=75 // pred_check
          %p540 = pneg %p105
        $region86: #{tpu_custom_call.1} parent=75 // pred_check_branch
          %542 = sbr.rel (%p540) target = $region88
        $region87: #{tpu_custom_call.1} parent=75 // pred_region
          %543 = dma.done [#allocation6], 16
        $region88: #{tpu_custom_call.1} parent=75 // pred_fallthru
          _
        // Predicated region
        $region89: #{tpu_custom_call.1} parent=75 // pred_check
          %p544 = pneg %p126
        $region90: #{tpu_custom_call.1} parent=75 // pred_check_branch
          %546 = sbr.rel (%p544) target = $region92
        $region91: #{tpu_custom_call.1} parent=75 // pred_region
          %547 = dma.done [#allocation9], 16
        $region92: #{tpu_custom_call.1} parent=75 // pred_fallthru
          _
        // Predicated region
        $region93: #{tpu_custom_call.1} parent=75 // pred_check
          %p548 = pneg %p147
        $region94: #{tpu_custom_call.1} parent=75 // pred_check_branch
          %550 = sbr.rel (%p548) target = $region96
        $region95: #{tpu_custom_call.1} parent=75 // pred_region
          %551 = dma.done [#allocation9], 3072
        $region96: #{tpu_custom_call.1} parent=75 // pred_fallthru
          _
        // Predicated region
        $region97: #{tpu_custom_call.1} parent=75 // pred_check
          %p552 = pneg %p189
        $region98: #{tpu_custom_call.1} parent=75 // pred_check_branch
          %554 = sbr.rel (%p552) target = $region100
        $region99: #{tpu_custom_call.1} parent=75 // pred_region
          %555 = dma.done [#allocation12], 1024
        $region100: #{tpu_custom_call.1} parent=75 // pred_fallthru
          _
        // Predicated region
        $region101: #{tpu_custom_call.1} parent=75 // pred_check
          %p556 = pneg %p273
        $region102: #{tpu_custom_call.1} parent=75 // pred_check_branch
          %558 = sbr.rel (%p556) target = $region104
        $region103: #{tpu_custom_call.1} parent=75 // pred_region
          %559 = dma.done [#allocation12], 2048
        $region104: #{tpu_custom_call.1} parent=75 // pred_fallthru
          _
        // Predicated region
        $region105: #{tpu_custom_call.1} parent=75 // pred_check
          %p560 = pneg %p315
        $region106: #{tpu_custom_call.1} parent=75 // pred_check_branch
          %562 = sbr.rel (%p560) target = $region108
        $region107: #{tpu_custom_call.1} parent=75 // pred_region
          %563 = dma.done [#allocation15], 2048
        $region108: #{tpu_custom_call.1} parent=75 // pred_fallthru
          _
        %s564 = sand.u32 %s45, 1
        %s565 = scalar_lea.sflag [#allocation3], %s564
        %s566 = sand.u32 %s45, 1
        %s567 = smul.addr %s566, 16
        %s568 = scalar_lea.vmem [#allocation2], %s567
        %p569 = pneg %p58
        %p570 = pneg %p55
        %s571 = sand.u32 %s37, 1
        %s572 = scalar_lea.sflag [#allocation6], %s571
        %s573 = sand.u32 %s71, 1
        %s574 = smul.addr %s573, 2
        %s575 = scalar_lea.vmem [#allocation5], %s574
        %p576 = pneg %p84
        %p577 = pneg %p81
        %p578 = pneg %p105
        %p579 = pneg %p102
        %p580 = pneg %p126
        %p581 = pneg %p123
        %p582 = pneg %p147
        %p583 = pneg %p144
        %p584 = pneg %p168
        %p585 = pneg %p165
        %p586 = pneg %p189
        %p587 = pneg %p186
        %p588 = pneg %p210
        %p589 = pneg %p207
        %p590 = pneg %p231
        %p591 = pneg %p228
        %p592 = pneg %p252
        %p593 = pneg %p249
        %p594 = pneg %p273
        %p595 = pneg %p270
        %p596 = pneg %p294
        %p597 = pneg %p291
        %p598 = pneg %p315
        %p599 = pneg %p312
        %p600 = pneg %p336
        %p601 = pneg %p333
        %p602 = pneg %p362
        %p603 = pneg %p359
        %s604 = sand.u32 %s349, 1
        %s605 = scalar_lea.sflag [#allocation4], %s604
        %s606 = sand.u32 %s349, 1
        %s607 = smul.addr %s606, 16
        %s608 = scalar_lea.vmem [#allocation16], %s607
        %s609 = smul.u32 2, %s37
        %s610 = smul.u32 2, %s37
        %s611 = smul.u32 2, %s37
        %v613 = vld [vmem:[%s526] sm:$0xff]
        %v614 = vld [vmem:[%s526 + $0x8] sm:$0xff]
        %v615 = vld [vmem:[%s535] sm:$0x1]
        %v616 = vld [vmem:[%s535 + $0x1] sm:$0x1]
        %vm617 = vcmp.eq.f32.partialorder %v615, 0.0
        %vm618 = vcmp.eq.f32.partialorder %v616, 0.0
        %v619 = vsel %vm617, -1e+09, 0.0
        %v620 = vsel %vm618, -1e+09, 0.0
        %v621 = vld [vmem:[#allocation7] sm:$0x1]
        %v622 = vld [vmem:[#allocation8] sm:$0x1]
        %623 = vadd.xlane.f32.xlu0 %v613
        %v624 = vpop.xlane.xlu0 %623
        %625 = vadd.xlane.f32.xlu0 %v614
        %v626 = vpop.xlane.xlu0 %625
        %v627 = vrcp.pop 128.0
        %v628 = vmul.f32 %v624, %v627
        %v629 = vmul.f32 %v626, %v627
        %v630 = vsub.f32 %v613, %v628
        %v631 = vsub.f32 %v614, %v629
        %v632 = vmul.f32 %v630, %v630
        %v633 = vmul.f32 %v631, %v631
        %634 = vadd.xlane.f32.xlu0 %v632
        %v635 = vpop.xlane.xlu0 %634
        %636 = vadd.xlane.f32.xlu0 %v633
        %v637 = vpop.xlane.xlu0 %636
        %v638 = vrcp.pop 127.0
        %v639 = vmul.f32 %v635, %v638
        %v640 = vmul.f32 %v637, %v638
        %v641 = vrsqrt.pop %v639
        %v642 = vmul.f32 %v639, %v641
        %vm643 = vcmp.eq.f32.partialorder %v639, inf
        %v644 = vsel %vm643, %v639, %v642
        %vm645 = vcmp.eq.f32.partialorder %v639, 0.0
        %v646 = vand.u32 %v639, 2147483648
        %v647 = vsel %vm645, %v646, %v644
        %v648 = vrsqrt.pop %v640
        %v649 = vmul.f32 %v640, %v648
        %vm650 = vcmp.eq.f32.partialorder %v640, inf
        %v651 = vsel %vm650, %v640, %v649
        %vm652 = vcmp.eq.f32.partialorder %v640, 0.0
        %v653 = vand.u32 %v640, 2147483648
        %v654 = vsel %vm652, %v653, %v651
        %v656 = vlaneseq
        %v657 = vshrl.u32 %v656, 7
        %v658 = vsub.s32 0, %v657
        %v659 = vrot.slane %v621, %v658
        %v661 = vmul.f32 %v659, %v630
        %v662 = vmul.f32 %v659, %v631
        %v663 = vadd.f32 %v647, 1e-06
        %v664 = vadd.f32 %v654, 1e-06
        %v665 = vrcp.pop %v663
        %v666 = vmul.f32 %v661, %v665
        %v667 = vrcp.pop %v664
        %v668 = vmul.f32 %v662, %v667
        %v670 = vlaneseq
        %v671 = vshrl.u32 %v670, 7
        %v672 = vsub.s32 0, %v671
        %v673 = vrot.slane %v622, %v672
        %v675 = vadd.f32 %v666, %v673
        %v676 = vadd.f32 %v668, %v673
        %v677 = vpack.c.bf16 %v676, %v675
        %v678 = vld [vmem:[#allocation10] sm:$0xff]
        %v679 = vld [vmem:[#allocation10 + $0x8] sm:$0xf]
        %v680 = vld [vmem:[#allocation10 + $0xc] sm:$0xff]
        %v681 = vld [vmem:[#allocation10 + $0x14] sm:$0xf]
        %v682 = vld [vmem:[#allocation10 + $0x18] sm:$0xff]
        %v683 = vld [vmem:[#allocation10 + $0x20] sm:$0xf]
        %v684 = vld [vmem:[#allocation10 + $0x24] sm:$0xff]
        %v685 = vld [vmem:[#allocation10 + $0x2c] sm:$0xf]
        %v686 = vld [vmem:[#allocation10 + $0x30] sm:$0xff]
        %v687 = vld [vmem:[#allocation10 + $0x38] sm:$0xf]
        %v688 = vld [vmem:[#allocation10 + $0x3c] sm:$0xff]
        %v689 = vld [vmem:[#allocation10 + $0x44] sm:$0xf]
        %v690 = vld [vmem:[#allocation10 + $0x48] sm:$0xff]
        %v691 = vld [vmem:[#allocation10 + $0x50] sm:$0xf]
        %v692 = vld [vmem:[#allocation10 + $0x54] sm:$0xff]
        %v693 = vld [vmem:[#allocation10 + $0x5c] sm:$0xf]
        %v694 = vld [vmem:[#allocation10 + $0x60] sm:$0xff]
        %v695 = vld [vmem:[#allocation10 + $0x68] sm:$0xf]
        %v696 = vld [vmem:[#allocation10 + $0x6c] sm:$0xff]
        %v697 = vld [vmem:[#allocation10 + $0x74] sm:$0xf]
        %v698 = vld [vmem:[#allocation10 + $0x78] sm:$0xff]
        %v699 = vld [vmem:[#allocation10 + $0x80] sm:$0xf]
        %v700 = vld [vmem:[#allocation10 + $0x84] sm:$0xff]
        %v701 = vld [vmem:[#allocation10 + $0x8c] sm:$0xf]
        %v702 = vld [vmem:[#allocation10 + $0x90] sm:$0xff]
        %v703 = vld [vmem:[#allocation10 + $0x98] sm:$0xf]
        %v704 = vld [vmem:[#allocation10 + $0x9c] sm:$0xff]
        %v705 = vld [vmem:[#allocation10 + $0xa4] sm:$0xf]
        %v706 = vld [vmem:[#allocation10 + $0xa8] sm:$0xff]
        %v707 = vld [vmem:[#allocation10 + $0xb0] sm:$0xf]
        %v708 = vld [vmem:[#allocation10 + $0xb4] sm:$0xff]
        %v709 = vld [vmem:[#allocation10 + $0xbc] sm:$0xf]
        %v710 = vld [vmem:[%s5] sm:$0x7]
        %v712 = vlaneseq
        %v713 = vshrl.u32 %v712, 7
        %v714 = vsub.s32 0, %v713
        %v715 = vrot.slane %v710, %v714
        %v716 = vlaneseq
        %v717 = vshrl.u32 %v716, 7
        %v718 = vsub.s32 1, %v717
        %v719 = vrot.slane %v710, %v718
        %v720 = vlaneseq
        %v721 = vshrl.u32 %v720, 7
        %v722 = vsub.s32 2, %v721
        %v723 = vrot.slane %v710, %v722
        %v759 = vunpack.c.l.b16 %v678
        %v760 = vunpack.c.h.b16 %v678
        %v761 = vunpack.c.l.b16 %v679
        %v762 = vunpack.c.l.b16 %v680
        %v763 = vunpack.c.h.b16 %v680
        %v764 = vunpack.c.l.b16 %v681
        %v765 = vunpack.c.l.b16 %v682
        %v766 = vunpack.c.h.b16 %v682
        %v767 = vunpack.c.l.b16 %v683
        %v768 = vunpack.c.l.b16 %v684
        %v769 = vunpack.c.h.b16 %v684
        %v770 = vunpack.c.l.b16 %v685
        %v771 = vunpack.c.l.b16 %v686
        %v772 = vunpack.c.h.b16 %v686
        %v773 = vunpack.c.l.b16 %v687
        %v774 = vunpack.c.l.b16 %v688
        %v775 = vunpack.c.h.b16 %v688
        %v776 = vunpack.c.l.b16 %v689
        %v777 = vunpack.c.l.b16 %v690
        %v778 = vunpack.c.h.b16 %v690
        %v779 = vunpack.c.l.b16 %v691
        %v780 = vunpack.c.l.b16 %v692
        %v781 = vunpack.c.h.b16 %v692
        %v782 = vunpack.c.l.b16 %v693
        %v783 = vunpack.c.l.b16 %v694
        %v784 = vunpack.c.h.b16 %v694
        %v785 = vunpack.c.l.b16 %v695
        %v786 = vunpack.c.l.b16 %v696
        %v787 = vunpack.c.h.b16 %v696
        %v788 = vunpack.c.l.b16 %v697
        %v789 = vunpack.c.l.b16 %v698
        %v790 = vunpack.c.h.b16 %v698
        %v791 = vunpack.c.l.b16 %v699
        %v792 = vunpack.c.l.b16 %v700
        %v793 = vunpack.c.h.b16 %v700
        %v794 = vunpack.c.l.b16 %v701
        %v795 = vunpack.c.l.b16 %v702
        %v796 = vunpack.c.h.b16 %v702
        %v797 = vunpack.c.l.b16 %v703
        %v798 = vunpack.c.l.b16 %v704
        %v799 = vunpack.c.h.b16 %v704
        %v800 = vunpack.c.l.b16 %v705
        %v801 = vunpack.c.l.b16 %v706
        %v802 = vunpack.c.h.b16 %v706
        %v803 = vunpack.c.l.b16 %v707
        %v804 = vunpack.c.l.b16 %v708
        %v805 = vunpack.c.h.b16 %v708
        %v806 = vunpack.c.l.b16 %v709
        %v807 = vpack.c.b16 %v762, %v759
        %v808 = vpack.c.b16 %v763, %v760
        %v809 = vpack.c.b16 %v764, %v761
        %v810 = vpack.c.b16 %v768, %v765
        %v811 = vpack.c.b16 %v769, %v766
        %v812 = vpack.c.b16 %v770, %v767
        %v813 = vpack.c.b16 %v774, %v771
        %v814 = vpack.c.b16 %v775, %v772
        %v815 = vpack.c.b16 %v776, %v773
        %v816 = vpack.c.b16 %v780, %v777
        %v817 = vpack.c.b16 %v781, %v778
        %v818 = vpack.c.b16 %v782, %v779
        %v819 = vpack.c.b16 %v786, %v783
        %v820 = vpack.c.b16 %v787, %v784
        %v821 = vpack.c.b16 %v788, %v785
        %v822 = vpack.c.b16 %v792, %v789
        %v823 = vpack.c.b16 %v793, %v790
        %v824 = vpack.c.b16 %v794, %v791
        %v825 = vpack.c.b16 %v798, %v795
        %v826 = vpack.c.b16 %v799, %v796
        %v827 = vpack.c.b16 %v800, %v797
        %v828 = vpack.c.b16 %v804, %v801
        %v829 = vpack.c.b16 %v805, %v802
        %v830 = vpack.c.b16 %v806, %v803
        %855 = vmatprep.subr.bf16.mxu0 %v829
        %856 = vmatpush1.bf16.msra.mxu0 %v828
        %857 = vmatprep.subr.bf16.mxu0 %v826
        %858 = vmatpush1.bf16.msra.mxu0 %v825
        %859 = vmatprep.subr.bf16.mxu0 %v823
        %860 = vmatpush1.bf16.msra.mxu0 %v822
        %861 = vmatprep.subr.bf16.mxu0 %v820
        %862 = vmatpush1.bf16.msra.mxu0 %v819
        %863 = vmatprep.subr.bf16.mxu0 %v817
        %864 = vmatpush1.bf16.msra.mxu0 %v816
        %865 = vmatprep.subr.bf16.mxu0 %v814
        %866 = vmatpush1.bf16.msra.mxu0 %v813
        %867 = vmatprep.subr.bf16.mxu0 %v811
        %868 = vmatpush1.bf16.msra.mxu0 %v810
        %869 = vmatprep.subr.bf16.mxu0 %v808
        %870 = vmatpush1.bf16.msra.mxu0 %v807
        %871 = vmatprep.subr.bf16.mxu0 0
        %872 = vmatpush2.bf16.msra.mxu0 0
        %873 = vmatprep.subr.bf16.mxu0 0
        %874 = vmatpush2.bf16.msra.mxu0 0
        %875 = vmatprep.subr.bf16.mxu0 0
        %876 = vmatpush2.bf16.msra.mxu0 0
        %877 = vmatprep.subr.bf16.mxu0 0
        %878 = vmatpush2.bf16.msra.mxu0 0
        %879 = vmatprep.subr.bf16.mxu0 0
        %880 = vmatpush2.bf16.msra.mxu0 0
        %881 = vmatprep.subr.bf16.mxu0 0
        %882 = vmatpush2.bf16.msra.mxu0 0
        %883 = vmatprep.subr.bf16.mxu0 0
        %884 = vmatpush2.bf16.msra.mxu0 0
        %885 = vmatprep.subr.bf16.mxu0 0
        %886 = vmatpush2.bf16.msra.mxu0 0
        %887 = vmatprep.mubr.bf16.mxu0 0
        %888 = vmatmul.mubr.bf16.gmra.mxu0 %v677
        %v889 = vpop.f32.mrf.mxu0
        %v890 = vadd.f32 %v715, %v889
        %v891 = vpop.f32.mrf.mxu0
        %v892 = vadd.f32 %v719, %v891
        %v893 = vpop.f32.mrf.mxu0
        %v894 = vadd.f32 %v715, %v893
        %v895 = vpop.f32.mrf.mxu0
        %v896 = vadd.f32 %v719, %v895
        %897 = vdwg.mxu0
        %898 = vmatprep.subr.bf16.mxu0 0
        %899 = vmatpush1.bf16.msra.mxu0 %v830
        %900 = vmatprep.subr.bf16.mxu0 0
        %901 = vmatpush1.bf16.msra.mxu0 %v827
        %902 = vmatprep.subr.bf16.mxu0 0
        %903 = vmatpush1.bf16.msra.mxu0 %v824
        %904 = vmatprep.subr.bf16.mxu0 0
        %905 = vmatpush1.bf16.msra.mxu0 %v821
        %906 = vmatprep.subr.bf16.mxu0 0
        %907 = vmatpush1.bf16.msra.mxu0 %v818
        %908 = vmatprep.subr.bf16.mxu0 0
        %909 = vmatpush1.bf16.msra.mxu0 %v815
        %910 = vmatprep.subr.bf16.mxu0 0
        %911 = vmatpush1.bf16.msra.mxu0 %v812
        %912 = vmatprep.subr.bf16.mxu0 0
        %913 = vmatpush1.bf16.msra.mxu0 %v809
        %914 = vmatprep.subr.bf16.mxu0 0
        %915 = vmatpush2.bf16.msra.mxu0 0
        %916 = vmatprep.subr.bf16.mxu0 0
        %917 = vmatpush2.bf16.msra.mxu0 0
        %918 = vmatprep.subr.bf16.mxu0 0
        %919 = vmatpush2.bf16.msra.mxu0 0
        %920 = vmatprep.subr.bf16.mxu0 0
        %921 = vmatpush2.bf16.msra.mxu0 0
        %922 = vmatprep.subr.bf16.mxu0 0
        %923 = vmatpush2.bf16.msra.mxu0 0
        %924 = vmatprep.subr.bf16.mxu0 0
        %925 = vmatpush2.bf16.msra.mxu0 0
        %926 = vmatprep.subr.bf16.mxu0 0
        %927 = vmatpush2.bf16.msra.mxu0 0
        %928 = vmatprep.subr.bf16.mxu0 0
        %929 = vmatpush2.bf16.msra.mxu0 0
        %930 = vmatprep.mubr.bf16.mxu0 0
        %931 = vmatmul.mubr.bf16.gmra.mxu0 %v677
        %v932 = vpop.f32.mrf.mxu0
        %v933 = vadd.f32 %v723, %v932
        %v934 = vpop.f32.mrf.mxu0
        %v935 = vpop.f32.mrf.mxu0
        %v936 = vadd.f32 %v723, %v935
        %v937 = vpop.f32.mrf.mxu0
        %938 = vdwg.mxu0
        %941 = vrot.lane.b32.xlu0 %v890, 96
        %v942 = vpop.permute.xlu0 %941
        %943 = vrot.lane.b32.xlu0 %v894, 96
        %v944 = vpop.permute.xlu0 %943
        %945 = vrot.lane.b32.xlu0 %v890, 64
        %v946 = vpop.permute.xlu0 %945
        %947 = vrot.lane.b32.xlu0 %v894, 64
        %v948 = vpop.permute.xlu0 %947
        %949 = vrot.lane.b32.xlu0 %v890, 32
        %v950 = vpop.permute.xlu0 %949
        %951 = vrot.lane.b32.xlu0 %v894, 32
        %v952 = vpop.permute.xlu0 %951
        %955 = vrot.lane.b32.xlu0 %v892, 96
        %v956 = vpop.permute.xlu0 %955
        %957 = vrot.lane.b32.xlu0 %v896, 96
        %v958 = vpop.permute.xlu0 %957
        %959 = vrot.lane.b32.xlu0 %v892, 64
        %v960 = vpop.permute.xlu0 %959
        %961 = vrot.lane.b32.xlu0 %v896, 64
        %v962 = vpop.permute.xlu0 %961
        %963 = vrot.lane.b32.xlu0 %v892, 32
        %v964 = vpop.permute.xlu0 %963
        %965 = vrot.lane.b32.xlu0 %v896, 32
        %v966 = vpop.permute.xlu0 %965
        %969 = vrot.lane.b32.xlu0 %v933, 96
        %v970 = vpop.permute.xlu0 %969
        %971 = vrot.lane.b32.xlu0 %v936, 96
        %v972 = vpop.permute.xlu0 %971
        %975 = vrot.lane.b32.xlu0 %v933, 64
        %v976 = vpop.permute.xlu0 %975
        %977 = vrot.lane.b32.xlu0 %v936, 64
        %v978 = vpop.permute.xlu0 %977
        %981 = vrot.lane.b32.xlu0 %v933, 32
        %v982 = vpop.permute.xlu0 %981
        %983 = vrot.lane.b32.xlu0 %v936, 32
        %v984 = vpop.permute.xlu0 %983
        %vm987 = vcmask 261120
        %v988 = vsel %vm987, %v890, 0
        %v990 = vsel %vm987, %v892, 0
        %992 = vmatprep.subr.mxu0 0.0
        %993 = vmatpush1.xpose.msra.mxu0 0.0
        %994 = vmatprep.subr.mxu0 0.0
        %995 = vmatpush1.xpose.msra.mxu0 0.0
        %996 = vmatprep.subr.mxu0 0.0
        %997 = vmatpush1.xpose.msra.mxu0 0.0
        %998 = vmatprep.subr.mxu0 0.0
        %999 = vmatpush1.xpose.msra.mxu0 0.0
        %1000 = vmatprep.subr.mxu0 0.0
        %1001 = vmatpush1.xpose.msra.mxu0 0.0
        %1002 = vmatprep.subr.mxu0 0.0
        %1003 = vmatpush1.xpose.msra.mxu0 0.0
        %1004 = vmatprep.subr.mxu0 0.0
        %1005 = vmatpush1.xpose.msra.mxu0 0.0
        %1006 = vmatprep.subr.mxu0 0.0
        %1007 = vmatpush1.xpose.msra.mxu0 0.0
        %1008 = vmatprep.subr.mxu0 0.0
        %1009 = vmatpush1.xpose.msra.mxu0 0.0
        %1010 = vmatprep.subr.mxu0 0.0
        %1011 = vmatpush1.xpose.msra.mxu0 0.0
        %1012 = vmatprep.subr.mxu0 0.0
        %1013 = vmatpush1.xpose.msra.mxu0 0.0
        %1014 = vmatprep.subr.mxu0 0.0
        %1015 = vmatpush1.xpose.msra.mxu0 0.0
        %1016 = vmatprep.subr.mxu0 0.0
        %1017 = vmatpush1.xpose.msra.mxu0 0.0
        %1018 = vmatprep.subr.mxu0 0.0
        %1019 = vmatpush1.xpose.msra.mxu0 0.0
        %1020 = vmatprep.subr.mxu0 0.0
        %1021 = vmatpush1.xpose.msra.mxu0 0.0
        %1022 = vmatprep.subr.mxu0 0.0
        %1023 = vmatpush1.xpose.msra.mxu0 %v990
        %1024 = vmatprep.subr.mxu0 0.0
        %1025 = vmatpush2.xpose.msra.mxu0 0.0
        %1026 = vmatprep.subr.mxu0 0.0
        %1027 = vmatpush2.xpose.msra.mxu0 0.0
        %1028 = vmatprep.subr.mxu0 0.0
        %1029 = vmatpush2.xpose.msra.mxu0 0.0
        %1030 = vmatprep.subr.mxu0 0.0
        %1031 = vmatpush2.xpose.msra.mxu0 0.0
        %1032 = vmatprep.subr.mxu0 0.0
        %1033 = vmatpush2.xpose.msra.mxu0 0.0
        %1034 = vmatprep.subr.mxu0 0.0
        %1035 = vmatpush2.xpose.msra.mxu0 0.0
        %1036 = vmatprep.subr.mxu0 0.0
        %1037 = vmatpush2.xpose.msra.mxu0 0.0
        %1038 = vmatprep.subr.mxu0 0.0
        %1039 = vmatpush2.xpose.msra.mxu0 0.0
        %1040 = vmatprep.subr.mxu0 0.0
        %1041 = vmatpush2.xpose.msra.mxu0 0.0
        %1042 = vmatprep.subr.mxu0 0.0
        %1043 = vmatpush2.xpose.msra.mxu0 0.0
        %1044 = vmatprep.subr.mxu0 0.0
        %1045 = vmatpush2.xpose.msra.mxu0 0.0
        %1046 = vmatprep.subr.mxu0 0.0
        %1047 = vmatpush2.xpose.msra.mxu0 0.0
        %1048 = vmatprep.subr.mxu0 0.0
        %1049 = vmatpush2.xpose.msra.mxu0 0.0
        %1050 = vmatprep.subr.mxu0 0.0
        %1051 = vmatpush2.xpose.msra.mxu0 0.0
        %1052 = vmatprep.subr.mxu0 0.0
        %1053 = vmatpush2.xpose.msra.mxu0 0.0
        %1054 = vmatprep.subr.mxu0 0.0
        %1055 = vmatpush2.xpose.msra.mxu0 0.0
        %1056 = vmatprep.mubr.f32.mxu0 0.0
        %1057 = vmatmul.mubr.f32.gmra.mxu0 %v988
        %v1058 = vpop.f32.mrf.mxu0
        %v1059 = vadd.f32 0.0, %v1058
        %v1060 = vpop.f32.mrf.mxu0
        %1061 = vdwg.mxu0
        %v1062 = vsel %vm987, %v894, 0
        %v1064 = vsel %vm987, %v896, 0
        %1066 = vmatprep.subr.mxu0 0.0
        %1067 = vmatpush1.xpose.msra.mxu0 0.0
        %1068 = vmatprep.subr.mxu0 0.0
        %1069 = vmatpush1.xpose.msra.mxu0 0.0
        %1070 = vmatprep.subr.mxu0 0.0
        %1071 = vmatpush1.xpose.msra.mxu0 0.0
        %1072 = vmatprep.subr.mxu0 0.0
        %1073 = vmatpush1.xpose.msra.mxu0 0.0
        %1074 = vmatprep.subr.mxu0 0.0
        %1075 = vmatpush1.xpose.msra.mxu0 0.0
        %1076 = vmatprep.subr.mxu0 0.0
        %1077 = vmatpush1.xpose.msra.mxu0 0.0
        %1078 = vmatprep.subr.mxu0 0.0
        %1079 = vmatpush1.xpose.msra.mxu0 0.0
        %1080 = vmatprep.subr.mxu0 0.0
        %1081 = vmatpush1.xpose.msra.mxu0 0.0
        %1082 = vmatprep.subr.mxu0 0.0
        %1083 = vmatpush1.xpose.msra.mxu0 0.0
        %1084 = vmatprep.subr.mxu0 0.0
        %1085 = vmatpush1.xpose.msra.mxu0 0.0
        %1086 = vmatprep.subr.mxu0 0.0
        %1087 = vmatpush1.xpose.msra.mxu0 0.0
        %1088 = vmatprep.subr.mxu0 0.0
        %1089 = vmatpush1.xpose.msra.mxu0 0.0
        %1090 = vmatprep.subr.mxu0 0.0
        %1091 = vmatpush1.xpose.msra.mxu0 0.0
        %1092 = vmatprep.subr.mxu0 0.0
        %1093 = vmatpush1.xpose.msra.mxu0 0.0
        %1094 = vmatprep.subr.mxu0 0.0
        %1095 = vmatpush1.xpose.msra.mxu0 0.0
        %1096 = vmatprep.subr.mxu0 0.0
        %1097 = vmatpush1.xpose.msra.mxu0 %v1064
        %1098 = vmatprep.subr.mxu0 0.0
        %1099 = vmatpush2.xpose.msra.mxu0 0.0
        %1100 = vmatprep.subr.mxu0 0.0
        %1101 = vmatpush2.xpose.msra.mxu0 0.0
        %1102 = vmatprep.subr.mxu0 0.0
        %1103 = vmatpush2.xpose.msra.mxu0 0.0
        %1104 = vmatprep.subr.mxu0 0.0
        %1105 = vmatpush2.xpose.msra.mxu0 0.0
        %1106 = vmatprep.subr.mxu0 0.0
        %1107 = vmatpush2.xpose.msra.mxu0 0.0
        %1108 = vmatprep.subr.mxu0 0.0
        %1109 = vmatpush2.xpose.msra.mxu0 0.0
        %1110 = vmatprep.subr.mxu0 0.0
        %1111 = vmatpush2.xpose.msra.mxu0 0.0
        %1112 = vmatprep.subr.mxu0 0.0
        %1113 = vmatpush2.xpose.msra.mxu0 0.0
        %1114 = vmatprep.subr.mxu0 0.0
        %1115 = vmatpush2.xpose.msra.mxu0 0.0
        %1116 = vmatprep.subr.mxu0 0.0
        %1117 = vmatpush2.xpose.msra.mxu0 0.0
        %1118 = vmatprep.subr.mxu0 0.0
        %1119 = vmatpush2.xpose.msra.mxu0 0.0
        %1120 = vmatprep.subr.mxu0 0.0
        %1121 = vmatpush2.xpose.msra.mxu0 0.0
        %1122 = vmatprep.subr.mxu0 0.0
        %1123 = vmatpush2.xpose.msra.mxu0 0.0
        %1124 = vmatprep.subr.mxu0 0.0
        %1125 = vmatpush2.xpose.msra.mxu0 0.0
        %1126 = vmatprep.subr.mxu0 0.0
        %1127 = vmatpush2.xpose.msra.mxu0 0.0
        %1128 = vmatprep.subr.mxu0 0.0
        %1129 = vmatpush2.xpose.msra.mxu0 0.0
        %1130 = vmatprep.mubr.f32.mxu0 0.0
        %1131 = vmatmul.mubr.f32.gmra.mxu0 %v1062
        %v1132 = vpop.f32.mrf.mxu0
        %v1133 = vadd.f32 0.0, %v1132
        %v1134 = vpop.f32.mrf.mxu0
        %1135 = vdwg.mxu0
        %v1136 = vsel %vm987, %v942, 0
        %v1138 = vsel %vm987, %v956, 0
        %1140 = vmatprep.subr.mxu0 0.0
        %1141 = vmatpush1.xpose.msra.mxu0 0.0
        %1142 = vmatprep.subr.mxu0 0.0
        %1143 = vmatpush1.xpose.msra.mxu0 0.0
        %1144 = vmatprep.subr.mxu0 0.0
        %1145 = vmatpush1.xpose.msra.mxu0 0.0
        %1146 = vmatprep.subr.mxu0 0.0
        %1147 = vmatpush1.xpose.msra.mxu0 0.0
        %1148 = vmatprep.subr.mxu0 0.0
        %1149 = vmatpush1.xpose.msra.mxu0 0.0
        %1150 = vmatprep.subr.mxu0 0.0
        %1151 = vmatpush1.xpose.msra.mxu0 0.0
        %1152 = vmatprep.subr.mxu0 0.0
        %1153 = vmatpush1.xpose.msra.mxu0 0.0
        %1154 = vmatprep.subr.mxu0 0.0
        %1155 = vmatpush1.xpose.msra.mxu0 0.0
        %1156 = vmatprep.subr.mxu0 0.0
        %1157 = vmatpush1.xpose.msra.mxu0 0.0
        %1158 = vmatprep.subr.mxu0 0.0
        %1159 = vmatpush1.xpose.msra.mxu0 0.0
        %1160 = vmatprep.subr.mxu0 0.0
        %1161 = vmatpush1.xpose.msra.mxu0 0.0
        %1162 = vmatprep.subr.mxu0 0.0
        %1163 = vmatpush1.xpose.msra.mxu0 0.0
        %1164 = vmatprep.subr.mxu0 0.0
        %1165 = vmatpush1.xpose.msra.mxu0 0.0
        %1166 = vmatprep.subr.mxu0 0.0
        %1167 = vmatpush1.xpose.msra.mxu0 0.0
        %1168 = vmatprep.subr.mxu0 0.0
        %1169 = vmatpush1.xpose.msra.mxu0 0.0
        %1170 = vmatprep.subr.mxu0 0.0
        %1171 = vmatpush1.xpose.msra.mxu0 %v1138
        %1172 = vmatprep.subr.mxu0 0.0
        %1173 = vmatpush2.xpose.msra.mxu0 0.0
        %1174 = vmatprep.subr.mxu0 0.0
        %1175 = vmatpush2.xpose.msra.mxu0 0.0
        %1176 = vmatprep.subr.mxu0 0.0
        %1177 = vmatpush2.xpose.msra.mxu0 0.0
        %1178 = vmatprep.subr.mxu0 0.0
        %1179 = vmatpush2.xpose.msra.mxu0 0.0
        %1180 = vmatprep.subr.mxu0 0.0
        %1181 = vmatpush2.xpose.msra.mxu0 0.0
        %1182 = vmatprep.subr.mxu0 0.0
        %1183 = vmatpush2.xpose.msra.mxu0 0.0
        %1184 = vmatprep.subr.mxu0 0.0
        %1185 = vmatpush2.xpose.msra.mxu0 0.0
        %1186 = vmatprep.subr.mxu0 0.0
        %1187 = vmatpush2.xpose.msra.mxu0 0.0
        %1188 = vmatprep.subr.mxu0 0.0
        %1189 = vmatpush2.xpose.msra.mxu0 0.0
        %1190 = vmatprep.subr.mxu0 0.0
        %1191 = vmatpush2.xpose.msra.mxu0 0.0
        %1192 = vmatprep.subr.mxu0 0.0
        %1193 = vmatpush2.xpose.msra.mxu0 0.0
        %1194 = vmatprep.subr.mxu0 0.0
        %1195 = vmatpush2.xpose.msra.mxu0 0.0
        %1196 = vmatprep.subr.mxu0 0.0
        %1197 = vmatpush2.xpose.msra.mxu0 0.0
        %1198 = vmatprep.subr.mxu0 0.0
        %1199 = vmatpush2.xpose.msra.mxu0 0.0
        %1200 = vmatprep.subr.mxu0 0.0
        %1201 = vmatpush2.xpose.msra.mxu0 0.0
        %1202 = vmatprep.subr.mxu0 0.0
        %1203 = vmatpush2.xpose.msra.mxu0 0.0
        %1204 = vmatprep.mubr.f32.mxu0 0.0
        %1205 = vmatmul.mubr.f32.gmra.mxu0 %v1136
        %v1206 = vpop.f32.mrf.mxu0
        %v1207 = vadd.f32 0.0, %v1206
        %v1208 = vpop.f32.mrf.mxu0
        %1209 = vdwg.mxu0
        %v1210 = vsel %vm987, %v944, 0
        %v1212 = vsel %vm987, %v958, 0
        %1214 = vmatprep.subr.mxu0 0.0
        %1215 = vmatpush1.xpose.msra.mxu0 0.0
        %1216 = vmatprep.subr.mxu0 0.0
        %1217 = vmatpush1.xpose.msra.mxu0 0.0
        %1218 = vmatprep.subr.mxu0 0.0
        %1219 = vmatpush1.xpose.msra.mxu0 0.0
        %1220 = vmatprep.subr.mxu0 0.0
        %1221 = vmatpush1.xpose.msra.mxu0 0.0
        %1222 = vmatprep.subr.mxu0 0.0
        %1223 = vmatpush1.xpose.msra.mxu0 0.0
        %1224 = vmatprep.subr.mxu0 0.0
        %1225 = vmatpush1.xpose.msra.mxu0 0.0
        %1226 = vmatprep.subr.mxu0 0.0
        %1227 = vmatpush1.xpose.msra.mxu0 0.0
        %1228 = vmatprep.subr.mxu0 0.0
        %1229 = vmatpush1.xpose.msra.mxu0 0.0
        %1230 = vmatprep.subr.mxu0 0.0
        %1231 = vmatpush1.xpose.msra.mxu0 0.0
        %1232 = vmatprep.subr.mxu0 0.0
        %1233 = vmatpush1.xpose.msra.mxu0 0.0
        %1234 = vmatprep.subr.mxu0 0.0
        %1235 = vmatpush1.xpose.msra.mxu0 0.0
        %1236 = vmatprep.subr.mxu0 0.0
        %1237 = vmatpush1.xpose.msra.mxu0 0.0
        %1238 = vmatprep.subr.mxu0 0.0
        %1239 = vmatpush1.xpose.msra.mxu0 0.0
        %1240 = vmatprep.subr.mxu0 0.0
        %1241 = vmatpush1.xpose.msra.mxu0 0.0
        %1242 = vmatprep.subr.mxu0 0.0
        %1243 = vmatpush1.xpose.msra.mxu0 0.0
        %1244 = vmatprep.subr.mxu0 0.0
        %1245 = vmatpush1.xpose.msra.mxu0 %v1212
        %1246 = vmatprep.subr.mxu0 0.0
        %1247 = vmatpush2.xpose.msra.mxu0 0.0
        %1248 = vmatprep.subr.mxu0 0.0
        %1249 = vmatpush2.xpose.msra.mxu0 0.0
        %1250 = vmatprep.subr.mxu0 0.0
        %1251 = vmatpush2.xpose.msra.mxu0 0.0
        %1252 = vmatprep.subr.mxu0 0.0
        %1253 = vmatpush2.xpose.msra.mxu0 0.0
        %1254 = vmatprep.subr.mxu0 0.0
        %1255 = vmatpush2.xpose.msra.mxu0 0.0
        %1256 = vmatprep.subr.mxu0 0.0
        %1257 = vmatpush2.xpose.msra.mxu0 0.0
        %1258 = vmatprep.subr.mxu0 0.0
        %1259 = vmatpush2.xpose.msra.mxu0 0.0
        %1260 = vmatprep.subr.mxu0 0.0
        %1261 = vmatpush2.xpose.msra.mxu0 0.0
        %1262 = vmatprep.subr.mxu0 0.0
        %1263 = vmatpush2.xpose.msra.mxu0 0.0
        %1264 = vmatprep.subr.mxu0 0.0
        %1265 = vmatpush2.xpose.msra.mxu0 0.0
        %1266 = vmatprep.subr.mxu0 0.0
        %1267 = vmatpush2.xpose.msra.mxu0 0.0
        %1268 = vmatprep.subr.mxu0 0.0
        %1269 = vmatpush2.xpose.msra.mxu0 0.0
        %1270 = vmatprep.subr.mxu0 0.0
        %1271 = vmatpush2.xpose.msra.mxu0 0.0
        %1272 = vmatprep.subr.mxu0 0.0
        %1273 = vmatpush2.xpose.msra.mxu0 0.0
        %1274 = vmatprep.subr.mxu0 0.0
        %1275 = vmatpush2.xpose.msra.mxu0 0.0
        %1276 = vmatprep.subr.mxu0 0.0
        %1277 = vmatpush2.xpose.msra.mxu0 0.0
        %1278 = vmatprep.mubr.f32.mxu0 0.0
        %1279 = vmatmul.mubr.f32.gmra.mxu0 %v1210
        %v1280 = vpop.f32.mrf.mxu0
        %v1281 = vadd.f32 0.0, %v1280
        %v1282 = vpop.f32.mrf.mxu0
        %1283 = vdwg.mxu0
        %v1284 = vsel %vm987, %v946, 0
        %v1286 = vsel %vm987, %v960, 0
        %1288 = vmatprep.subr.mxu0 0.0
        %1289 = vmatpush1.xpose.msra.mxu0 0.0
        %1290 = vmatprep.subr.mxu0 0.0
        %1291 = vmatpush1.xpose.msra.mxu0 0.0
        %1292 = vmatprep.subr.mxu0 0.0
        %1293 = vmatpush1.xpose.msra.mxu0 0.0
        %1294 = vmatprep.subr.mxu0 0.0
        %1295 = vmatpush1.xpose.msra.mxu0 0.0
        %1296 = vmatprep.subr.mxu0 0.0
        %1297 = vmatpush1.xpose.msra.mxu0 0.0
        %1298 = vmatprep.subr.mxu0 0.0
        %1299 = vmatpush1.xpose.msra.mxu0 0.0
        %1300 = vmatprep.subr.mxu0 0.0
        %1301 = vmatpush1.xpose.msra.mxu0 0.0
        %1302 = vmatprep.subr.mxu0 0.0
        %1303 = vmatpush1.xpose.msra.mxu0 0.0
        %1304 = vmatprep.subr.mxu0 0.0
        %1305 = vmatpush1.xpose.msra.mxu0 0.0
        %1306 = vmatprep.subr.mxu0 0.0
        %1307 = vmatpush1.xpose.msra.mxu0 0.0
        %1308 = vmatprep.subr.mxu0 0.0
        %1309 = vmatpush1.xpose.msra.mxu0 0.0
        %1310 = vmatprep.subr.mxu0 0.0
        %1311 = vmatpush1.xpose.msra.mxu0 0.0
        %1312 = vmatprep.subr.mxu0 0.0
        %1313 = vmatpush1.xpose.msra.mxu0 0.0
        %1314 = vmatprep.subr.mxu0 0.0
        %1315 = vmatpush1.xpose.msra.mxu0 0.0
        %1316 = vmatprep.subr.mxu0 0.0
        %1317 = vmatpush1.xpose.msra.mxu0 0.0
        %1318 = vmatprep.subr.mxu0 0.0
        %1319 = vmatpush1.xpose.msra.mxu0 %v1286
        %1320 = vmatprep.subr.mxu0 0.0
        %1321 = vmatpush2.xpose.msra.mxu0 0.0
        %1322 = vmatprep.subr.mxu0 0.0
        %1323 = vmatpush2.xpose.msra.mxu0 0.0
        %1324 = vmatprep.subr.mxu0 0.0
        %1325 = vmatpush2.xpose.msra.mxu0 0.0
        %1326 = vmatprep.subr.mxu0 0.0
        %1327 = vmatpush2.xpose.msra.mxu0 0.0
        %1328 = vmatprep.subr.mxu0 0.0
        %1329 = vmatpush2.xpose.msra.mxu0 0.0
        %1330 = vmatprep.subr.mxu0 0.0
        %1331 = vmatpush2.xpose.msra.mxu0 0.0
        %1332 = vmatprep.subr.mxu0 0.0
        %1333 = vmatpush2.xpose.msra.mxu0 0.0
        %1334 = vmatprep.subr.mxu0 0.0
        %1335 = vmatpush2.xpose.msra.mxu0 0.0
        %1336 = vmatprep.subr.mxu0 0.0
        %1337 = vmatpush2.xpose.msra.mxu0 0.0
        %1338 = vmatprep.subr.mxu0 0.0
        %1339 = vmatpush2.xpose.msra.mxu0 0.0
        %1340 = vmatprep.subr.mxu0 0.0
        %1341 = vmatpush2.xpose.msra.mxu0 0.0
        %1342 = vmatprep.subr.mxu0 0.0
        %1343 = vmatpush2.xpose.msra.mxu0 0.0
        %1344 = vmatprep.subr.mxu0 0.0
        %1345 = vmatpush2.xpose.msra.mxu0 0.0
        %1346 = vmatprep.subr.mxu0 0.0
        %1347 = vmatpush2.xpose.msra.mxu0 0.0
        %1348 = vmatprep.subr.mxu0 0.0
        %1349 = vmatpush2.xpose.msra.mxu0 0.0
        %1350 = vmatprep.subr.mxu0 0.0
        %1351 = vmatpush2.xpose.msra.mxu0 0.0
        %1352 = vmatprep.mubr.f32.mxu0 0.0
        %1353 = vmatmul.mubr.f32.gmra.mxu0 %v1284
        %v1354 = vpop.f32.mrf.mxu0
        %v1355 = vadd.f32 0.0, %v1354
        %v1356 = vpop.f32.mrf.mxu0
        %1357 = vdwg.mxu0
        %v1358 = vsel %vm987, %v948, 0
        %v1360 = vsel %vm987, %v962, 0
        %1362 = vmatprep.subr.mxu0 0.0
        %1363 = vmatpush1.xpose.msra.mxu0 0.0
        %1364 = vmatprep.subr.mxu0 0.0
        %1365 = vmatpush1.xpose.msra.mxu0 0.0
        %1366 = vmatprep.subr.mxu0 0.0
        %1367 = vmatpush1.xpose.msra.mxu0 0.0
        %1368 = vmatprep.subr.mxu0 0.0
        %1369 = vmatpush1.xpose.msra.mxu0 0.0
        %1370 = vmatprep.subr.mxu0 0.0
        %1371 = vmatpush1.xpose.msra.mxu0 0.0
        %1372 = vmatprep.subr.mxu0 0.0
        %1373 = vmatpush1.xpose.msra.mxu0 0.0
        %1374 = vmatprep.subr.mxu0 0.0
        %1375 = vmatpush1.xpose.msra.mxu0 0.0
        %1376 = vmatprep.subr.mxu0 0.0
        %1377 = vmatpush1.xpose.msra.mxu0 0.0
        %1378 = vmatprep.subr.mxu0 0.0
        %1379 = vmatpush1.xpose.msra.mxu0 0.0
        %1380 = vmatprep.subr.mxu0 0.0
        %1381 = vmatpush1.xpose.msra.mxu0 0.0
        %1382 = vmatprep.subr.mxu0 0.0
        %1383 = vmatpush1.xpose.msra.mxu0 0.0
        %1384 = vmatprep.subr.mxu0 0.0
        %1385 = vmatpush1.xpose.msra.mxu0 0.0
        %1386 = vmatprep.subr.mxu0 0.0
        %1387 = vmatpush1.xpose.msra.mxu0 0.0
        %1388 = vmatprep.subr.mxu0 0.0
        %1389 = vmatpush1.xpose.msra.mxu0 0.0
        %1390 = vmatprep.subr.mxu0 0.0
        %1391 = vmatpush1.xpose.msra.mxu0 0.0
        %1392 = vmatprep.subr.mxu0 0.0
        %1393 = vmatpush1.xpose.msra.mxu0 %v1360
        %1394 = vmatprep.subr.mxu0 0.0
        %1395 = vmatpush2.xpose.msra.mxu0 0.0
        %1396 = vmatprep.subr.mxu0 0.0
        %1397 = vmatpush2.xpose.msra.mxu0 0.0
        %1398 = vmatprep.subr.mxu0 0.0
        %1399 = vmatpush2.xpose.msra.mxu0 0.0
        %1400 = vmatprep.subr.mxu0 0.0
        %1401 = vmatpush2.xpose.msra.mxu0 0.0
        %1402 = vmatprep.subr.mxu0 0.0
        %1403 = vmatpush2.xpose.msra.mxu0 0.0
        %1404 = vmatprep.subr.mxu0 0.0
        %1405 = vmatpush2.xpose.msra.mxu0 0.0
        %1406 = vmatprep.subr.mxu0 0.0
        %1407 = vmatpush2.xpose.msra.mxu0 0.0
        %1408 = vmatprep.subr.mxu0 0.0
        %1409 = vmatpush2.xpose.msra.mxu0 0.0
        %1410 = vmatprep.subr.mxu0 0.0
        %1411 = vmatpush2.xpose.msra.mxu0 0.0
        %1412 = vmatprep.subr.mxu0 0.0
        %1413 = vmatpush2.xpose.msra.mxu0 0.0
        %1414 = vmatprep.subr.mxu0 0.0
        %1415 = vmatpush2.xpose.msra.mxu0 0.0
        %1416 = vmatprep.subr.mxu0 0.0
        %1417 = vmatpush2.xpose.msra.mxu0 0.0
        %1418 = vmatprep.subr.mxu0 0.0
        %1419 = vmatpush2.xpose.msra.mxu0 0.0
        %1420 = vmatprep.subr.mxu0 0.0
        %1421 = vmatpush2.xpose.msra.mxu0 0.0
        %1422 = vmatprep.subr.mxu0 0.0
        %1423 = vmatpush2.xpose.msra.mxu0 0.0
        %1424 = vmatprep.subr.mxu0 0.0
        %1425 = vmatpush2.xpose.msra.mxu0 0.0
        %1426 = vmatprep.mubr.f32.mxu0 0.0
        %1427 = vmatmul.mubr.f32.gmra.mxu0 %v1358
        %v1428 = vpop.f32.mrf.mxu0
        %v1429 = vadd.f32 0.0, %v1428
        %v1430 = vpop.f32.mrf.mxu0
        %1431 = vdwg.mxu0
        %v1432 = vsel %vm987, %v950, 0
        %v1434 = vsel %vm987, %v964, 0
        %1436 = vmatprep.subr.mxu0 0.0
        %1437 = vmatpush1.xpose.msra.mxu0 0.0
        %1438 = vmatprep.subr.mxu0 0.0
        %1439 = vmatpush1.xpose.msra.mxu0 0.0
        %1440 = vmatprep.subr.mxu0 0.0
        %1441 = vmatpush1.xpose.msra.mxu0 0.0
        %1442 = vmatprep.subr.mxu0 0.0
        %1443 = vmatpush1.xpose.msra.mxu0 0.0
        %1444 = vmatprep.subr.mxu0 0.0
        %1445 = vmatpush1.xpose.msra.mxu0 0.0
        %1446 = vmatprep.subr.mxu0 0.0
        %1447 = vmatpush1.xpose.msra.mxu0 0.0
        %1448 = vmatprep.subr.mxu0 0.0
        %1449 = vmatpush1.xpose.msra.mxu0 0.0
        %1450 = vmatprep.subr.mxu0 0.0
        %1451 = vmatpush1.xpose.msra.mxu0 0.0
        %1452 = vmatprep.subr.mxu0 0.0
        %1453 = vmatpush1.xpose.msra.mxu0 0.0
        %1454 = vmatprep.subr.mxu0 0.0
        %1455 = vmatpush1.xpose.msra.mxu0 0.0
        %1456 = vmatprep.subr.mxu0 0.0
        %1457 = vmatpush1.xpose.msra.mxu0 0.0
        %1458 = vmatprep.subr.mxu0 0.0
        %1459 = vmatpush1.xpose.msra.mxu0 0.0
        %1460 = vmatprep.subr.mxu0 0.0
        %1461 = vmatpush1.xpose.msra.mxu0 0.0
        %1462 = vmatprep.subr.mxu0 0.0
        %1463 = vmatpush1.xpose.msra.mxu0 0.0
        %1464 = vmatprep.subr.mxu0 0.0
        %1465 = vmatpush1.xpose.msra.mxu0 0.0
        %1466 = vmatprep.subr.mxu0 0.0
        %1467 = vmatpush1.xpose.msra.mxu0 %v1434
        %1468 = vmatprep.subr.mxu0 0.0
        %1469 = vmatpush2.xpose.msra.mxu0 0.0
        %1470 = vmatprep.subr.mxu0 0.0
        %1471 = vmatpush2.xpose.msra.mxu0 0.0
        %1472 = vmatprep.subr.mxu0 0.0
        %1473 = vmatpush2.xpose.msra.mxu0 0.0
        %1474 = vmatprep.subr.mxu0 0.0
        %1475 = vmatpush2.xpose.msra.mxu0 0.0
        %1476 = vmatprep.subr.mxu0 0.0
        %1477 = vmatpush2.xpose.msra.mxu0 0.0
        %1478 = vmatprep.subr.mxu0 0.0
        %1479 = vmatpush2.xpose.msra.mxu0 0.0
        %1480 = vmatprep.subr.mxu0 0.0
        %1481 = vmatpush2.xpose.msra.mxu0 0.0
        %1482 = vmatprep.subr.mxu0 0.0
        %1483 = vmatpush2.xpose.msra.mxu0 0.0
        %1484 = vmatprep.subr.mxu0 0.0
        %1485 = vmatpush2.xpose.msra.mxu0 0.0
        %1486 = vmatprep.subr.mxu0 0.0
        %1487 = vmatpush2.xpose.msra.mxu0 0.0
        %1488 = vmatprep.subr.mxu0 0.0
        %1489 = vmatpush2.xpose.msra.mxu0 0.0
        %1490 = vmatprep.subr.mxu0 0.0
        %1491 = vmatpush2.xpose.msra.mxu0 0.0
        %1492 = vmatprep.subr.mxu0 0.0
        %1493 = vmatpush2.xpose.msra.mxu0 0.0
        %1494 = vmatprep.subr.mxu0 0.0
        %1495 = vmatpush2.xpose.msra.mxu0 0.0
        %1496 = vmatprep.subr.mxu0 0.0
        %1497 = vmatpush2.xpose.msra.mxu0 0.0
        %1498 = vmatprep.subr.mxu0 0.0
        %1499 = vmatpush2.xpose.msra.mxu0 0.0
        %1500 = vmatprep.mubr.f32.mxu0 0.0
        %1501 = vmatmul.mubr.f32.gmra.mxu0 %v1432
        %v1502 = vpop.f32.mrf.mxu0
        %v1503 = vadd.f32 0.0, %v1502
        %v1504 = vpop.f32.mrf.mxu0
        %1505 = vdwg.mxu0
        %v1506 = vsel %vm987, %v952, 0
        %v1508 = vsel %vm987, %v966, 0
        %1510 = vmatprep.subr.mxu0 0.0
        %1511 = vmatpush1.xpose.msra.mxu0 0.0
        %1512 = vmatprep.subr.mxu0 0.0
        %1513 = vmatpush1.xpose.msra.mxu0 0.0
        %1514 = vmatprep.subr.mxu0 0.0
        %1515 = vmatpush1.xpose.msra.mxu0 0.0
        %1516 = vmatprep.subr.mxu0 0.0
        %1517 = vmatpush1.xpose.msra.mxu0 0.0
        %1518 = vmatprep.subr.mxu0 0.0
        %1519 = vmatpush1.xpose.msra.mxu0 0.0
        %1520 = vmatprep.subr.mxu0 0.0
        %1521 = vmatpush1.xpose.msra.mxu0 0.0
        %1522 = vmatprep.subr.mxu0 0.0
        %1523 = vmatpush1.xpose.msra.mxu0 0.0
        %1524 = vmatprep.subr.mxu0 0.0
        %1525 = vmatpush1.xpose.msra.mxu0 0.0
        %1526 = vmatprep.subr.mxu0 0.0
        %1527 = vmatpush1.xpose.msra.mxu0 0.0
        %1528 = vmatprep.subr.mxu0 0.0
        %1529 = vmatpush1.xpose.msra.mxu0 0.0
        %1530 = vmatprep.subr.mxu0 0.0
        %1531 = vmatpush1.xpose.msra.mxu0 0.0
        %1532 = vmatprep.subr.mxu0 0.0
        %1533 = vmatpush1.xpose.msra.mxu0 0.0
        %1534 = vmatprep.subr.mxu0 0.0
        %1535 = vmatpush1.xpose.msra.mxu0 0.0
        %1536 = vmatprep.subr.mxu0 0.0
        %1537 = vmatpush1.xpose.msra.mxu0 0.0
        %1538 = vmatprep.subr.mxu0 0.0
        %1539 = vmatpush1.xpose.msra.mxu0 0.0
        %1540 = vmatprep.subr.mxu0 0.0
        %1541 = vmatpush1.xpose.msra.mxu0 %v1508
        %1542 = vmatprep.subr.mxu0 0.0
        %1543 = vmatpush2.xpose.msra.mxu0 0.0
        %1544 = vmatprep.subr.mxu0 0.0
        %1545 = vmatpush2.xpose.msra.mxu0 0.0
        %1546 = vmatprep.subr.mxu0 0.0
        %1547 = vmatpush2.xpose.msra.mxu0 0.0
        %1548 = vmatprep.subr.mxu0 0.0
        %1549 = vmatpush2.xpose.msra.mxu0 0.0
        %1550 = vmatprep.subr.mxu0 0.0
        %1551 = vmatpush2.xpose.msra.mxu0 0.0
        %1552 = vmatprep.subr.mxu0 0.0
        %1553 = vmatpush2.xpose.msra.mxu0 0.0
        %1554 = vmatprep.subr.mxu0 0.0
        %1555 = vmatpush2.xpose.msra.mxu0 0.0
        %1556 = vmatprep.subr.mxu0 0.0
        %1557 = vmatpush2.xpose.msra.mxu0 0.0
        %1558 = vmatprep.subr.mxu0 0.0
        %1559 = vmatpush2.xpose.msra.mxu0 0.0
        %1560 = vmatprep.subr.mxu0 0.0
        %1561 = vmatpush2.xpose.msra.mxu0 0.0
        %1562 = vmatprep.subr.mxu0 0.0
        %1563 = vmatpush2.xpose.msra.mxu0 0.0
        %1564 = vmatprep.subr.mxu0 0.0
        %1565 = vmatpush2.xpose.msra.mxu0 0.0
        %1566 = vmatprep.subr.mxu0 0.0
        %1567 = vmatpush2.xpose.msra.mxu0 0.0
        %1568 = vmatprep.subr.mxu0 0.0
        %1569 = vmatpush2.xpose.msra.mxu0 0.0
        %1570 = vmatprep.subr.mxu0 0.0
        %1571 = vmatpush2.xpose.msra.mxu0 0.0
        %1572 = vmatprep.subr.mxu0 0.0
        %1573 = vmatpush2.xpose.msra.mxu0 0.0
        %1574 = vmatprep.mubr.f32.mxu0 0.0
        %1575 = vmatmul.mubr.f32.gmra.mxu0 %v1506
        %v1576 = vpop.f32.mrf.mxu0
        %v1577 = vadd.f32 0.0, %v1576
        %v1578 = vpop.f32.mrf.mxu0
        %1579 = vdwg.mxu0
        %v1580 = vmul.f32 %v1059, 0.17677669
        %v1581 = vmul.f32 %v1133, 0.17677669
        %v1582 = vmul.f32 %v1207, 0.17677669
        %v1583 = vmul.f32 %v1281, 0.17677669
        %v1584 = vmul.f32 %v1355, 0.17677669
        %v1585 = vmul.f32 %v1429, 0.17677669
        %v1586 = vmul.f32 %v1503, 0.17677669
        %v1587 = vmul.f32 %v1577, 0.17677669
        %v1590 = vlaneseq
        %v1591 = vshrl.u32 %v1590, 7
        %v1592 = vsub.s32 0, %v1591
        %v1593 = vrot.slane %v619, %v1592
        %v1594 = vlaneseq
        %v1595 = vshrl.u32 %v1594, 7
        %v1596 = vsub.s32 0, %v1595
        %v1597 = vrot.slane %v620, %v1596
        %v1600 = vadd.f32 %v1580, %v1593
        %v1601 = vadd.f32 %v1581, %v1597
        %v1602 = vadd.f32 %v1582, %v1593
        %v1603 = vadd.f32 %v1583, %v1597
        %v1604 = vadd.f32 %v1584, %v1593
        %v1605 = vadd.f32 %v1585, %v1597
        %v1606 = vadd.f32 %v1586, %v1593
        %v1607 = vadd.f32 %v1587, %v1597
        %vm1608 = vcmask 64512
        %v1609 = vsel %vm1608, %v1600, -inf
        %1610 = vmax.xlane.f32.xlu0 %v1609
        %v1611 = vpop.xlane.xlu0 %1610
        %v1612 = vsel %vm1608, %v1601, -inf
        %1613 = vmax.xlane.f32.xlu0 %v1612
        %v1614 = vpop.xlane.xlu0 %1613
        %v1615 = vsel %vm1608, %v1602, -inf
        %1616 = vmax.xlane.f32.xlu0 %v1615
        %v1617 = vpop.xlane.xlu0 %1616
        %v1618 = vsel %vm1608, %v1603, -inf
        %1619 = vmax.xlane.f32.xlu0 %v1618
        %v1620 = vpop.xlane.xlu0 %1619
        %v1621 = vsel %vm1608, %v1604, -inf
        %1622 = vmax.xlane.f32.xlu0 %v1621
        %v1623 = vpop.xlane.xlu0 %1622
        %v1624 = vsel %vm1608, %v1605, -inf
        %1625 = vmax.xlane.f32.xlu0 %v1624
        %v1626 = vpop.xlane.xlu0 %1625
        %v1627 = vsel %vm1608, %v1606, -inf
        %1628 = vmax.xlane.f32.xlu0 %v1627
        %v1629 = vpop.xlane.xlu0 %1628
        %v1630 = vsel %vm1608, %v1607, -inf
        %1631 = vmax.xlane.f32.xlu0 %v1630
        %v1632 = vpop.xlane.xlu0 %1631
        %v1633 = vsub.f32 %v1600, %v1611
        %v1634 = vsub.f32 %v1601, %v1614
        %v1635 = vsub.f32 %v1602, %v1617
        %v1636 = vsub.f32 %v1603, %v1620
        %v1637 = vsub.f32 %v1604, %v1623
        %v1638 = vsub.f32 %v1605, %v1626
        %v1639 = vsub.f32 %v1606, %v1629
        %v1640 = vsub.f32 %v1607, %v1632
        %v1641 = vmul.f32 %v1633, 1.442695
        %v1642 = vpow.pop %v1641
        %v1643 = vmul.f32 %v1634, 1.442695
        %v1644 = vpow.pop %v1643
        %v1645 = vmul.f32 %v1635, 1.442695
        %v1646 = vpow.pop %v1645
        %v1647 = vmul.f32 %v1636, 1.442695
        %v1648 = vpow.pop %v1647
        %v1649 = vmul.f32 %v1637, 1.442695
        %v1650 = vpow.pop %v1649
        %v1651 = vmul.f32 %v1638, 1.442695
        %v1652 = vpow.pop %v1651
        %v1653 = vmul.f32 %v1639, 1.442695
        %v1654 = vpow.pop %v1653
        %v1655 = vmul.f32 %v1640, 1.442695
        %v1656 = vpow.pop %v1655
        %v1657 = vsel %vm1608, %v1642, 0.0
        %1658 = vadd.xlane.f32.xlu0 %v1657
        %v1659 = vpop.xlane.xlu0 %1658
        %v1660 = vsel %vm1608, %v1644, 0.0
        %1661 = vadd.xlane.f32.xlu0 %v1660
        %v1662 = vpop.xlane.xlu0 %1661
        %v1663 = vsel %vm1608, %v1646, 0.0
        %1664 = vadd.xlane.f32.xlu0 %v1663
        %v1665 = vpop.xlane.xlu0 %1664
        %v1666 = vsel %vm1608, %v1648, 0.0
        %1667 = vadd.xlane.f32.xlu0 %v1666
        %v1668 = vpop.xlane.xlu0 %1667
        %v1669 = vsel %vm1608, %v1650, 0.0
        %1670 = vadd.xlane.f32.xlu0 %v1669
        %v1671 = vpop.xlane.xlu0 %1670
        %v1672 = vsel %vm1608, %v1652, 0.0
        %1673 = vadd.xlane.f32.xlu0 %v1672
        %v1674 = vpop.xlane.xlu0 %1673
        %v1675 = vsel %vm1608, %v1654, 0.0
        %1676 = vadd.xlane.f32.xlu0 %v1675
        %v1677 = vpop.xlane.xlu0 %1676
        %v1678 = vsel %vm1608, %v1656, 0.0
        %1679 = vadd.xlane.f32.xlu0 %v1678
        %v1680 = vpop.xlane.xlu0 %1679
        %v1681 = vrcp.pop %v1659
        %v1682 = vrcp.pop %v1662
        %v1683 = vrcp.pop %v1665
        %v1684 = vrcp.pop %v1668
        %v1685 = vrcp.pop %v1671
        %v1686 = vrcp.pop %v1674
        %v1687 = vrcp.pop %v1677
        %v1688 = vrcp.pop %v1680
        %v1689 = vmul.f32 %v1642, %v1681
        %v1690 = vmul.f32 %v1644, %v1682
        %v1691 = vmul.f32 %v1646, %v1683
        %v1692 = vmul.f32 %v1648, %v1684
        %v1693 = vmul.f32 %v1650, %v1685
        %v1694 = vmul.f32 %v1652, %v1686
        %v1695 = vmul.f32 %v1654, %v1687
        %v1696 = vmul.f32 %v1656, %v1688
        %v1697 = vpack.c.bf16 %v1689, %v1689
        %v1698 = vpack.c.bf16 %v1690, %v1690
        %v1699 = vpack.c.bf16 %v1691, %v1691
        %v1700 = vpack.c.bf16 %v1692, %v1692
        %v1701 = vpack.c.bf16 %v1693, %v1693
        %v1702 = vpack.c.bf16 %v1694, %v1694
        %v1703 = vpack.c.bf16 %v1695, %v1695
        %v1704 = vpack.c.bf16 %v1696, %v1696
        %v1705 = vpack.c.bf16 %v933, %v933
        %v1706 = vpack.c.bf16 %v936, %v936
        %v1707 = vpack.c.bf16 %v970, %v970
        %v1708 = vpack.c.bf16 %v972, %v972
        %v1709 = vpack.c.bf16 %v976, %v976
        %v1710 = vpack.c.bf16 %v978, %v978
        %v1711 = vpack.c.bf16 %v982, %v982
        %v1712 = vpack.c.bf16 %v984, %v984
        %v1714 = vsel %vm1608, %v1697, 0
        %vm1716 = vcmask 1043456
        %v1718 = vsel %vm1716, %v1705, 0
        %1720 = vmatprep.subr.bf16.mxu0 0
        %1721 = vmatpush1.bf16.msra.mxu0 0
        %1722 = vmatprep.subr.bf16.mxu0 0
        %1723 = vmatpush1.bf16.msra.mxu0 0
        %1724 = vmatprep.subr.bf16.mxu0 0
        %1725 = vmatpush1.bf16.msra.mxu0 0
        %1726 = vmatprep.subr.bf16.mxu0 0
        %1727 = vmatpush1.bf16.msra.mxu0 0
        %1728 = vmatprep.subr.bf16.mxu0 0
        %1729 = vmatpush1.bf16.msra.mxu0 0
        %1730 = vmatprep.subr.bf16.mxu0 0
        %1731 = vmatpush1.bf16.msra.mxu0 0
        %1732 = vmatprep.subr.bf16.mxu0 0
        %1733 = vmatpush1.bf16.msra.mxu0 0
        %1734 = vmatprep.subr.bf16.mxu0 0
        %1735 = vmatpush1.bf16.msra.mxu0 %v1718
        %1736 = vmatprep.subr.bf16.mxu0 0
        %1737 = vmatpush2.bf16.msra.mxu0 0
        %1738 = vmatprep.subr.bf16.mxu0 0
        %1739 = vmatpush2.bf16.msra.mxu0 0
        %1740 = vmatprep.subr.bf16.mxu0 0
        %1741 = vmatpush2.bf16.msra.mxu0 0
        %1742 = vmatprep.subr.bf16.mxu0 0
        %1743 = vmatpush2.bf16.msra.mxu0 0
        %1744 = vmatprep.subr.bf16.mxu0 0
        %1745 = vmatpush2.bf16.msra.mxu0 0
        %1746 = vmatprep.subr.bf16.mxu0 0
        %1747 = vmatpush2.bf16.msra.mxu0 0
        %1748 = vmatprep.subr.bf16.mxu0 0
        %1749 = vmatpush2.bf16.msra.mxu0 0
        %1750 = vmatprep.subr.bf16.mxu0 0
        %1751 = vmatpush2.bf16.msra.mxu0 0
        %1752 = vmatprep.mubr.bf16.mxu0 0
        %1753 = vmatmul.mubr.bf16.gmra.mxu0 %v1714
        %v1754 = vpop.f32.mrf.mxu0
        %v1755 = vadd.f32 0.0, %v1754
        %v1756 = vpop.f32.mrf.mxu0
        %v1757 = vpop.f32.mrf.mxu0
        %v1758 = vpop.f32.mrf.mxu0
        %1759 = vdwg.mxu0
        %v1761 = vsel %vm1608, %v1698, 0
        %v1764 = vsel %vm1716, %v1706, 0
        %1766 = vmatprep.subr.bf16.mxu0 0
        %1767 = vmatpush1.bf16.msra.mxu0 0
        %1768 = vmatprep.subr.bf16.mxu0 0
        %1769 = vmatpush1.bf16.msra.mxu0 0
        %1770 = vmatprep.subr.bf16.mxu0 0
        %1771 = vmatpush1.bf16.msra.mxu0 0
        %1772 = vmatprep.subr.bf16.mxu0 0
        %1773 = vmatpush1.bf16.msra.mxu0 0
        %1774 = vmatprep.subr.bf16.mxu0 0
        %1775 = vmatpush1.bf16.msra.mxu0 0
        %1776 = vmatprep.subr.bf16.mxu0 0
        %1777 = vmatpush1.bf16.msra.mxu0 0
        %1778 = vmatprep.subr.bf16.mxu0 0
        %1779 = vmatpush1.bf16.msra.mxu0 0
        %1780 = vmatprep.subr.bf16.mxu0 0
        %1781 = vmatpush1.bf16.msra.mxu0 %v1764
        %1782 = vmatprep.subr.bf16.mxu0 0
        %1783 = vmatpush2.bf16.msra.mxu0 0
        %1784 = vmatprep.subr.bf16.mxu0 0
        %1785 = vmatpush2.bf16.msra.mxu0 0
        %1786 = vmatprep.subr.bf16.mxu0 0
        %1787 = vmatpush2.bf16.msra.mxu0 0
        %1788 = vmatprep.subr.bf16.mxu0 0
        %1789 = vmatpush2.bf16.msra.mxu0 0
        %1790 = vmatprep.subr.bf16.mxu0 0
        %1791 = vmatpush2.bf16.msra.mxu0 0
        %1792 = vmatprep.subr.bf16.mxu0 0
        %1793 = vmatpush2.bf16.msra.mxu0 0
        %1794 = vmatprep.subr.bf16.mxu0 0
        %1795 = vmatpush2.bf16.msra.mxu0 0
        %1796 = vmatprep.subr.bf16.mxu0 0
        %1797 = vmatpush2.bf16.msra.mxu0 0
        %1798 = vmatprep.mubr.bf16.mxu0 0
        %1799 = vmatmul.mubr.bf16.gmra.mxu0 %v1761
        %v1800 = vpop.f32.mrf.mxu0
        %v1801 = vadd.f32 0.0, %v1800
        %v1802 = vpop.f32.mrf.mxu0
        %v1803 = vpop.f32.mrf.mxu0
        %v1804 = vpop.f32.mrf.mxu0
        %1805 = vdwg.mxu0
        %v1807 = vsel %vm1608, %v1699, 0
        %v1810 = vsel %vm1716, %v1707, 0
        %1812 = vmatprep.subr.bf16.mxu0 0
        %1813 = vmatpush1.bf16.msra.mxu0 0
        %1814 = vmatprep.subr.bf16.mxu0 0
        %1815 = vmatpush1.bf16.msra.mxu0 0
        %1816 = vmatprep.subr.bf16.mxu0 0
        %1817 = vmatpush1.bf16.msra.mxu0 0
        %1818 = vmatprep.subr.bf16.mxu0 0
        %1819 = vmatpush1.bf16.msra.mxu0 0
        %1820 = vmatprep.subr.bf16.mxu0 0
        %1821 = vmatpush1.bf16.msra.mxu0 0
        %1822 = vmatprep.subr.bf16.mxu0 0
        %1823 = vmatpush1.bf16.msra.mxu0 0
        %1824 = vmatprep.subr.bf16.mxu0 0
        %1825 = vmatpush1.bf16.msra.mxu0 0
        %1826 = vmatprep.subr.bf16.mxu0 0
        %1827 = vmatpush1.bf16.msra.mxu0 %v1810
        %1828 = vmatprep.subr.bf16.mxu0 0
        %1829 = vmatpush2.bf16.msra.mxu0 0
        %1830 = vmatprep.subr.bf16.mxu0 0
        %1831 = vmatpush2.bf16.msra.mxu0 0
        %1832 = vmatprep.subr.bf16.mxu0 0
        %1833 = vmatpush2.bf16.msra.mxu0 0
        %1834 = vmatprep.subr.bf16.mxu0 0
        %1835 = vmatpush2.bf16.msra.mxu0 0
        %1836 = vmatprep.subr.bf16.mxu0 0
        %1837 = vmatpush2.bf16.msra.mxu0 0
        %1838 = vmatprep.subr.bf16.mxu0 0
        %1839 = vmatpush2.bf16.msra.mxu0 0
        %1840 = vmatprep.subr.bf16.mxu0 0
        %1841 = vmatpush2.bf16.msra.mxu0 0
        %1842 = vmatprep.subr.bf16.mxu0 0
        %1843 = vmatpush2.bf16.msra.mxu0 0
        %1844 = vmatprep.mubr.bf16.mxu0 0
        %1845 = vmatmul.mubr.bf16.gmra.mxu0 %v1807
        %v1846 = vpop.f32.mrf.mxu0
        %v1847 = vadd.f32 0.0, %v1846
        %v1848 = vpop.f32.mrf.mxu0
        %v1849 = vpop.f32.mrf.mxu0
        %v1850 = vpop.f32.mrf.mxu0
        %1851 = vdwg.mxu0
        %v1853 = vsel %vm1608, %v1700, 0
        %v1856 = vsel %vm1716, %v1708, 0
        %1858 = vmatprep.subr.bf16.mxu0 0
        %1859 = vmatpush1.bf16.msra.mxu0 0
        %1860 = vmatprep.subr.bf16.mxu0 0
        %1861 = vmatpush1.bf16.msra.mxu0 0
        %1862 = vmatprep.subr.bf16.mxu0 0
        %1863 = vmatpush1.bf16.msra.mxu0 0
        %1864 = vmatprep.subr.bf16.mxu0 0
        %1865 = vmatpush1.bf16.msra.mxu0 0
        %1866 = vmatprep.subr.bf16.mxu0 0
        %1867 = vmatpush1.bf16.msra.mxu0 0
        %1868 = vmatprep.subr.bf16.mxu0 0
        %1869 = vmatpush1.bf16.msra.mxu0 0
        %1870 = vmatprep.subr.bf16.mxu0 0
        %1871 = vmatpush1.bf16.msra.mxu0 0
        %1872 = vmatprep.subr.bf16.mxu0 0
        %1873 = vmatpush1.bf16.msra.mxu0 %v1856
        %1874 = vmatprep.subr.bf16.mxu0 0
        %1875 = vmatpush2.bf16.msra.mxu0 0
        %1876 = vmatprep.subr.bf16.mxu0 0
        %1877 = vmatpush2.bf16.msra.mxu0 0
        %1878 = vmatprep.subr.bf16.mxu0 0
        %1879 = vmatpush2.bf16.msra.mxu0 0
        %1880 = vmatprep.subr.bf16.mxu0 0
        %1881 = vmatpush2.bf16.msra.mxu0 0
        %1882 = vmatprep.subr.bf16.mxu0 0
        %1883 = vmatpush2.bf16.msra.mxu0 0
        %1884 = vmatprep.subr.bf16.mxu0 0
        %1885 = vmatpush2.bf16.msra.mxu0 0
        %1886 = vmatprep.subr.bf16.mxu0 0
        %1887 = vmatpush2.bf16.msra.mxu0 0
        %1888 = vmatprep.subr.bf16.mxu0 0
        %1889 = vmatpush2.bf16.msra.mxu0 0
        %1890 = vmatprep.mubr.bf16.mxu0 0
        %1891 = vmatmul.mubr.bf16.gmra.mxu0 %v1853
        %v1892 = vpop.f32.mrf.mxu0
        %v1893 = vadd.f32 0.0, %v1892
        %v1894 = vpop.f32.mrf.mxu0
        %v1895 = vpop.f32.mrf.mxu0
        %v1896 = vpop.f32.mrf.mxu0
        %1897 = vdwg.mxu0
        %v1899 = vsel %vm1608, %v1701, 0
        %v1902 = vsel %vm1716, %v1709, 0
        %1904 = vmatprep.subr.bf16.mxu0 0
        %1905 = vmatpush1.bf16.msra.mxu0 0
        %1906 = vmatprep.subr.bf16.mxu0 0
        %1907 = vmatpush1.bf16.msra.mxu0 0
        %1908 = vmatprep.subr.bf16.mxu0 0
        %1909 = vmatpush1.bf16.msra.mxu0 0
        %1910 = vmatprep.subr.bf16.mxu0 0
        %1911 = vmatpush1.bf16.msra.mxu0 0
        %1912 = vmatprep.subr.bf16.mxu0 0
        %1913 = vmatpush1.bf16.msra.mxu0 0
        %1914 = vmatprep.subr.bf16.mxu0 0
        %1915 = vmatpush1.bf16.msra.mxu0 0
        %1916 = vmatprep.subr.bf16.mxu0 0
        %1917 = vmatpush1.bf16.msra.mxu0 0
        %1918 = vmatprep.subr.bf16.mxu0 0
        %1919 = vmatpush1.bf16.msra.mxu0 %v1902
        %1920 = vmatprep.subr.bf16.mxu0 0
        %1921 = vmatpush2.bf16.msra.mxu0 0
        %1922 = vmatprep.subr.bf16.mxu0 0
        %1923 = vmatpush2.bf16.msra.mxu0 0
        %1924 = vmatprep.subr.bf16.mxu0 0
        %1925 = vmatpush2.bf16.msra.mxu0 0
        %1926 = vmatprep.subr.bf16.mxu0 0
        %1927 = vmatpush2.bf16.msra.mxu0 0
        %1928 = vmatprep.subr.bf16.mxu0 0
        %1929 = vmatpush2.bf16.msra.mxu0 0
        %1930 = vmatprep.subr.bf16.mxu0 0
        %1931 = vmatpush2.bf16.msra.mxu0 0
        %1932 = vmatprep.subr.bf16.mxu0 0
        %1933 = vmatpush2.bf16.msra.mxu0 0
        %1934 = vmatprep.subr.bf16.mxu0 0
        %1935 = vmatpush2.bf16.msra.mxu0 0
        %1936 = vmatprep.mubr.bf16.mxu0 0
        %1937 = vmatmul.mubr.bf16.gmra.mxu0 %v1899
        %v1938 = vpop.f32.mrf.mxu0
        %v1939 = vadd.f32 0.0, %v1938
        %v1940 = vpop.f32.mrf.mxu0
        %v1941 = vpop.f32.mrf.mxu0
        %v1942 = vpop.f32.mrf.mxu0
        %1943 = vdwg.mxu0
        %v1945 = vsel %vm1608, %v1702, 0
        %v1948 = vsel %vm1716, %v1710, 0
        %1950 = vmatprep.subr.bf16.mxu0 0
        %1951 = vmatpush1.bf16.msra.mxu0 0
        %1952 = vmatprep.subr.bf16.mxu0 0
        %1953 = vmatpush1.bf16.msra.mxu0 0
        %1954 = vmatprep.subr.bf16.mxu0 0
        %1955 = vmatpush1.bf16.msra.mxu0 0
        %1956 = vmatprep.subr.bf16.mxu0 0
        %1957 = vmatpush1.bf16.msra.mxu0 0
        %1958 = vmatprep.subr.bf16.mxu0 0
        %1959 = vmatpush1.bf16.msra.mxu0 0
        %1960 = vmatprep.subr.bf16.mxu0 0
        %1961 = vmatpush1.bf16.msra.mxu0 0
        %1962 = vmatprep.subr.bf16.mxu0 0
        %1963 = vmatpush1.bf16.msra.mxu0 0
        %1964 = vmatprep.subr.bf16.mxu0 0
        %1965 = vmatpush1.bf16.msra.mxu0 %v1948
        %1966 = vmatprep.subr.bf16.mxu0 0
        %1967 = vmatpush2.bf16.msra.mxu0 0
        %1968 = vmatprep.subr.bf16.mxu0 0
        %1969 = vmatpush2.bf16.msra.mxu0 0
        %1970 = vmatprep.subr.bf16.mxu0 0
        %1971 = vmatpush2.bf16.msra.mxu0 0
        %1972 = vmatprep.subr.bf16.mxu0 0
        %1973 = vmatpush2.bf16.msra.mxu0 0
        %1974 = vmatprep.subr.bf16.mxu0 0
        %1975 = vmatpush2.bf16.msra.mxu0 0
        %1976 = vmatprep.subr.bf16.mxu0 0
        %1977 = vmatpush2.bf16.msra.mxu0 0
        %1978 = vmatprep.subr.bf16.mxu0 0
        %1979 = vmatpush2.bf16.msra.mxu0 0
        %1980 = vmatprep.subr.bf16.mxu0 0
        %1981 = vmatpush2.bf16.msra.mxu0 0
        %1982 = vmatprep.mubr.bf16.mxu0 0
        %1983 = vmatmul.mubr.bf16.gmra.mxu0 %v1945
        %v1984 = vpop.f32.mrf.mxu0
        %v1985 = vadd.f32 0.0, %v1984
        %v1986 = vpop.f32.mrf.mxu0
        %v1987 = vpop.f32.mrf.mxu0
        %v1988 = vpop.f32.mrf.mxu0
        %1989 = vdwg.mxu0
        %v1991 = vsel %vm1608, %v1703, 0
        %v1994 = vsel %vm1716, %v1711, 0
        %1996 = vmatprep.subr.bf16.mxu0 0
        %1997 = vmatpush1.bf16.msra.mxu0 0
        %1998 = vmatprep.subr.bf16.mxu0 0
        %1999 = vmatpush1.bf16.msra.mxu0 0
        %2000 = vmatprep.subr.bf16.mxu0 0
        %2001 = vmatpush1.bf16.msra.mxu0 0
        %2002 = vmatprep.subr.bf16.mxu0 0
        %2003 = vmatpush1.bf16.msra.mxu0 0
        %2004 = vmatprep.subr.bf16.mxu0 0
        %2005 = vmatpush1.bf16.msra.mxu0 0
        %2006 = vmatprep.subr.bf16.mxu0 0
        %2007 = vmatpush1.bf16.msra.mxu0 0
        %2008 = vmatprep.subr.bf16.mxu0 0
        %2009 = vmatpush1.bf16.msra.mxu0 0
        %2010 = vmatprep.subr.bf16.mxu0 0
        %2011 = vmatpush1.bf16.msra.mxu0 %v1994
        %2012 = vmatprep.subr.bf16.mxu0 0
        %2013 = vmatpush2.bf16.msra.mxu0 0
        %2014 = vmatprep.subr.bf16.mxu0 0
        %2015 = vmatpush2.bf16.msra.mxu0 0
        %2016 = vmatprep.subr.bf16.mxu0 0
        %2017 = vmatpush2.bf16.msra.mxu0 0
        %2018 = vmatprep.subr.bf16.mxu0 0
        %2019 = vmatpush2.bf16.msra.mxu0 0
        %2020 = vmatprep.subr.bf16.mxu0 0
        %2021 = vmatpush2.bf16.msra.mxu0 0
        %2022 = vmatprep.subr.bf16.mxu0 0
        %2023 = vmatpush2.bf16.msra.mxu0 0
        %2024 = vmatprep.subr.bf16.mxu0 0
        %2025 = vmatpush2.bf16.msra.mxu0 0
        %2026 = vmatprep.subr.bf16.mxu0 0
        %2027 = vmatpush2.bf16.msra.mxu0 0
        %2028 = vmatprep.mubr.bf16.mxu0 0
        %2029 = vmatmul.mubr.bf16.gmra.mxu0 %v1991
        %v2030 = vpop.f32.mrf.mxu0
        %v2031 = vadd.f32 0.0, %v2030
        %v2032 = vpop.f32.mrf.mxu0
        %v2033 = vpop.f32.mrf.mxu0
        %v2034 = vpop.f32.mrf.mxu0
        %2035 = vdwg.mxu0
        %v2037 = vsel %vm1608, %v1704, 0
        %v2040 = vsel %vm1716, %v1712, 0
        %2042 = vmatprep.subr.bf16.mxu0 0
        %2043 = vmatpush1.bf16.msra.mxu0 0
        %2044 = vmatprep.subr.bf16.mxu0 0
        %2045 = vmatpush1.bf16.msra.mxu0 0
        %2046 = vmatprep.subr.bf16.mxu0 0
        %2047 = vmatpush1.bf16.msra.mxu0 0
        %2048 = vmatprep.subr.bf16.mxu0 0
        %2049 = vmatpush1.bf16.msra.mxu0 0
        %2050 = vmatprep.subr.bf16.mxu0 0
        %2051 = vmatpush1.bf16.msra.mxu0 0
        %2052 = vmatprep.subr.bf16.mxu0 0
        %2053 = vmatpush1.bf16.msra.mxu0 0
        %2054 = vmatprep.subr.bf16.mxu0 0
        %2055 = vmatpush1.bf16.msra.mxu0 0
        %2056 = vmatprep.subr.bf16.mxu0 0
        %2057 = vmatpush1.bf16.msra.mxu0 %v2040
        %2058 = vmatprep.subr.bf16.mxu0 0
        %2059 = vmatpush2.bf16.msra.mxu0 0
        %2060 = vmatprep.subr.bf16.mxu0 0
        %2061 = vmatpush2.bf16.msra.mxu0 0
        %2062 = vmatprep.subr.bf16.mxu0 0
        %2063 = vmatpush2.bf16.msra.mxu0 0
        %2064 = vmatprep.subr.bf16.mxu0 0
        %2065 = vmatpush2.bf16.msra.mxu0 0
        %2066 = vmatprep.subr.bf16.mxu0 0
        %2067 = vmatpush2.bf16.msra.mxu0 0
        %2068 = vmatprep.subr.bf16.mxu0 0
        %2069 = vmatpush2.bf16.msra.mxu0 0
        %2070 = vmatprep.subr.bf16.mxu0 0
        %2071 = vmatpush2.bf16.msra.mxu0 0
        %2072 = vmatprep.subr.bf16.mxu0 0
        %2073 = vmatpush2.bf16.msra.mxu0 0
        %2074 = vmatprep.mubr.bf16.mxu0 0
        %2075 = vmatmul.mubr.bf16.gmra.mxu0 %v2037
        %v2076 = vpop.f32.mrf.mxu0
        %v2077 = vadd.f32 0.0, %v2076
        %v2078 = vpop.f32.mrf.mxu0
        %v2079 = vpop.f32.mrf.mxu0
        %v2080 = vpop.f32.mrf.mxu0
        %2081 = vdwg.mxu0
        %v2082 = vpack.c.bf16 %v1801, %v1755
        %v2083 = vpack.c.bf16 %v1893, %v1847
        %v2084 = vpack.c.bf16 %v1985, %v1939
        %v2085 = vpack.c.bf16 %v2077, %v2031
        %v2086 = vld [vmem:[#allocation11] sm:$0xf]
        %v2087 = vld [vmem:[#allocation11 + $0x4] sm:$0xf]
        %v2088 = vld [vmem:[#allocation11 + $0x8] sm:$0xf]
        %v2089 = vld [vmem:[#allocation11 + $0xc] sm:$0xf]
        %v2090 = vld [vmem:[#allocation11 + $0x10] sm:$0xf]
        %v2091 = vld [vmem:[#allocation11 + $0x14] sm:$0xf]
        %v2092 = vld [vmem:[#allocation11 + $0x18] sm:$0xf]
        %v2093 = vld [vmem:[#allocation11 + $0x1c] sm:$0xf]
        %v2094 = vld [vmem:[#allocation11 + $0x20] sm:$0xf]
        %v2095 = vld [vmem:[#allocation11 + $0x24] sm:$0xf]
        %v2096 = vld [vmem:[#allocation11 + $0x28] sm:$0xf]
        %v2097 = vld [vmem:[#allocation11 + $0x2c] sm:$0xf]
        %v2098 = vld [vmem:[#allocation11 + $0x30] sm:$0xf]
        %v2099 = vld [vmem:[#allocation11 + $0x34] sm:$0xf]
        %v2100 = vld [vmem:[#allocation11 + $0x38] sm:$0xf]
        %v2101 = vld [vmem:[#allocation11 + $0x3c] sm:$0xf]
        %v2106 = vunpack.c.l.b16 %v2086
        %v2107 = vunpack.c.l.b16 %v2087
        %v2108 = vunpack.c.l.b16 %v2088
        %v2109 = vunpack.c.l.b16 %v2089
        %v2110 = vpack.c.b16 %v2107, %v2106
        %v2111 = vpack.c.b16 %v2109, %v2108
        %v2115 = vsel %vm987, %v2082, 0
        %2117 = vmatprep.subr.bf16.mxu0 0
        %2118 = vmatpush1.bf16.msra.mxu0 0
        %2119 = vmatprep.subr.bf16.mxu0 0
        %2120 = vmatpush1.bf16.msra.mxu0 0
        %2121 = vmatprep.subr.bf16.mxu0 0
        %2122 = vmatpush1.bf16.msra.mxu0 0
        %2123 = vmatprep.subr.bf16.mxu0 0
        %2124 = vmatpush1.bf16.msra.mxu0 0
        %2125 = vmatprep.subr.bf16.mxu0 0
        %2126 = vmatpush1.bf16.msra.mxu0 0
        %2127 = vmatprep.subr.bf16.mxu0 0
        %2128 = vmatpush1.bf16.msra.mxu0 0
        %2129 = vmatprep.subr.bf16.mxu0 0
        %2130 = vmatpush1.bf16.msra.mxu0 %v2111
        %2131 = vmatprep.subr.bf16.mxu0 0
        %2132 = vmatpush1.bf16.msra.mxu0 %v2110
        %2133 = vmatprep.subr.bf16.mxu0 0
        %2134 = vmatpush2.bf16.msra.mxu0 0
        %2135 = vmatprep.subr.bf16.mxu0 0
        %2136 = vmatpush2.bf16.msra.mxu0 0
        %2137 = vmatprep.subr.bf16.mxu0 0
        %2138 = vmatpush2.bf16.msra.mxu0 0
        %2139 = vmatprep.subr.bf16.mxu0 0
        %2140 = vmatpush2.bf16.msra.mxu0 0
        %2141 = vmatprep.subr.bf16.mxu0 0
        %2142 = vmatpush2.bf16.msra.mxu0 0
        %2143 = vmatprep.subr.bf16.mxu0 0
        %2144 = vmatpush2.bf16.msra.mxu0 0
        %2145 = vmatprep.subr.bf16.mxu0 0
        %2146 = vmatpush2.bf16.msra.mxu0 0
        %2147 = vmatprep.subr.bf16.mxu0 0
        %2148 = vmatpush2.bf16.msra.mxu0 0
        %2149 = vmatprep.mubr.bf16.mxu0 0
        %2150 = vmatmul.mubr.bf16.gmra.mxu0 %v2115
        %v2151 = vpop.f32.mrf.mxu0
        %v2152 = vadd.f32 0.0, %v2151
        %v2153 = vpop.f32.mrf.mxu0
        %v2154 = vpop.f32.mrf.mxu0
        %v2155 = vadd.f32 0.0, %v2154
        %v2156 = vpop.f32.mrf.mxu0
        %2157 = vdwg.mxu0
        %v2162 = vunpack.c.l.b16 %v2090
        %v2163 = vunpack.c.l.b16 %v2091
        %v2164 = vunpack.c.l.b16 %v2092
        %v2165 = vunpack.c.l.b16 %v2093
        %v2166 = vpack.c.b16 %v2163, %v2162
        %v2167 = vpack.c.b16 %v2165, %v2164
        %v2171 = vsel %vm987, %v2083, 0
        %2173 = vmatprep.subr.bf16.mxu0 0
        %2174 = vmatpush1.bf16.msra.mxu0 0
        %2175 = vmatprep.subr.bf16.mxu0 0
        %2176 = vmatpush1.bf16.msra.mxu0 0
        %2177 = vmatprep.subr.bf16.mxu0 0
        %2178 = vmatpush1.bf16.msra.mxu0 0
        %2179 = vmatprep.subr.bf16.mxu0 0
        %2180 = vmatpush1.bf16.msra.mxu0 0
        %2181 = vmatprep.subr.bf16.mxu0 0
        %2182 = vmatpush1.bf16.msra.mxu0 0
        %2183 = vmatprep.subr.bf16.mxu0 0
        %2184 = vmatpush1.bf16.msra.mxu0 0
        %2185 = vmatprep.subr.bf16.mxu0 0
        %2186 = vmatpush1.bf16.msra.mxu0 %v2167
        %2187 = vmatprep.subr.bf16.mxu0 0
        %2188 = vmatpush1.bf16.msra.mxu0 %v2166
        %2189 = vmatprep.subr.bf16.mxu0 0
        %2190 = vmatpush2.bf16.msra.mxu0 0
        %2191 = vmatprep.subr.bf16.mxu0 0
        %2192 = vmatpush2.bf16.msra.mxu0 0
        %2193 = vmatprep.subr.bf16.mxu0 0
        %2194 = vmatpush2.bf16.msra.mxu0 0
        %2195 = vmatprep.subr.bf16.mxu0 0
        %2196 = vmatpush2.bf16.msra.mxu0 0
        %2197 = vmatprep.subr.bf16.mxu0 0
        %2198 = vmatpush2.bf16.msra.mxu0 0
        %2199 = vmatprep.subr.bf16.mxu0 0
        %2200 = vmatpush2.bf16.msra.mxu0 0
        %2201 = vmatprep.subr.bf16.mxu0 0
        %2202 = vmatpush2.bf16.msra.mxu0 0
        %2203 = vmatprep.subr.bf16.mxu0 0
        %2204 = vmatpush2.bf16.msra.mxu0 0
        %2205 = vmatprep.mubr.bf16.mxu0 0
        %2206 = vmatmul.mubr.bf16.gmra.mxu0 %v2171
        %v2207 = vpop.f32.mrf.mxu0
        %v2208 = vadd.f32 0.0, %v2207
        %v2209 = vpop.f32.mrf.mxu0
        %v2210 = vpop.f32.mrf.mxu0
        %v2211 = vadd.f32 0.0, %v2210
        %v2212 = vpop.f32.mrf.mxu0
        %2213 = vdwg.mxu0
        %v2218 = vunpack.c.l.b16 %v2094
        %v2219 = vunpack.c.l.b16 %v2095
        %v2220 = vunpack.c.l.b16 %v2096
        %v2221 = vunpack.c.l.b16 %v2097
        %v2222 = vpack.c.b16 %v2219, %v2218
        %v2223 = vpack.c.b16 %v2221, %v2220
        %v2227 = vsel %vm987, %v2084, 0
        %2229 = vmatprep.subr.bf16.mxu0 0
        %2230 = vmatpush1.bf16.msra.mxu0 0
        %2231 = vmatprep.subr.bf16.mxu0 0
        %2232 = vmatpush1.bf16.msra.mxu0 0
        %2233 = vmatprep.subr.bf16.mxu0 0
        %2234 = vmatpush1.bf16.msra.mxu0 0
        %2235 = vmatprep.subr.bf16.mxu0 0
        %2236 = vmatpush1.bf16.msra.mxu0 0
        %2237 = vmatprep.subr.bf16.mxu0 0
        %2238 = vmatpush1.bf16.msra.mxu0 0
        %2239 = vmatprep.subr.bf16.mxu0 0
        %2240 = vmatpush1.bf16.msra.mxu0 0
        %2241 = vmatprep.subr.bf16.mxu0 0
        %2242 = vmatpush1.bf16.msra.mxu0 %v2223
        %2243 = vmatprep.subr.bf16.mxu0 0
        %2244 = vmatpush1.bf16.msra.mxu0 %v2222
        %2245 = vmatprep.subr.bf16.mxu0 0
        %2246 = vmatpush2.bf16.msra.mxu0 0
        %2247 = vmatprep.subr.bf16.mxu0 0
        %2248 = vmatpush2.bf16.msra.mxu0 0
        %2249 = vmatprep.subr.bf16.mxu0 0
        %2250 = vmatpush2.bf16.msra.mxu0 0
        %2251 = vmatprep.subr.bf16.mxu0 0
        %2252 = vmatpush2.bf16.msra.mxu0 0
        %2253 = vmatprep.subr.bf16.mxu0 0
        %2254 = vmatpush2.bf16.msra.mxu0 0
        %2255 = vmatprep.subr.bf16.mxu0 0
        %2256 = vmatpush2.bf16.msra.mxu0 0
        %2257 = vmatprep.subr.bf16.mxu0 0
        %2258 = vmatpush2.bf16.msra.mxu0 0
        %2259 = vmatprep.subr.bf16.mxu0 0
        %2260 = vmatpush2.bf16.msra.mxu0 0
        %2261 = vmatprep.mubr.bf16.mxu0 0
        %2262 = vmatmul.mubr.bf16.gmra.mxu0 %v2227
        %v2263 = vpop.f32.mrf.mxu0
        %v2264 = vadd.f32 0.0, %v2263
        %v2265 = vpop.f32.mrf.mxu0
        %v2266 = vpop.f32.mrf.mxu0
        %v2267 = vadd.f32 0.0, %v2266
        %v2268 = vpop.f32.mrf.mxu0
        %2269 = vdwg.mxu0
        %v2274 = vunpack.c.l.b16 %v2098
        %v2275 = vunpack.c.l.b16 %v2099
        %v2276 = vunpack.c.l.b16 %v2100
        %v2277 = vunpack.c.l.b16 %v2101
        %v2278 = vpack.c.b16 %v2275, %v2274
        %v2279 = vpack.c.b16 %v2277, %v2276
        %v2283 = vsel %vm987, %v2085, 0
        %2285 = vmatprep.subr.bf16.mxu0 0
        %2286 = vmatpush1.bf16.msra.mxu0 0
        %2287 = vmatprep.subr.bf16.mxu0 0
        %2288 = vmatpush1.bf16.msra.mxu0 0
        %2289 = vmatprep.subr.bf16.mxu0 0
        %2290 = vmatpush1.bf16.msra.mxu0 0
        %2291 = vmatprep.subr.bf16.mxu0 0
        %2292 = vmatpush1.bf16.msra.mxu0 0
        %2293 = vmatprep.subr.bf16.mxu0 0
        %2294 = vmatpush1.bf16.msra.mxu0 0
        %2295 = vmatprep.subr.bf16.mxu0 0
        %2296 = vmatpush1.bf16.msra.mxu0 0
        %2297 = vmatprep.subr.bf16.mxu0 0
        %2298 = vmatpush1.bf16.msra.mxu0 %v2279
        %2299 = vmatprep.subr.bf16.mxu0 0
        %2300 = vmatpush1.bf16.msra.mxu0 %v2278
        %2301 = vmatprep.subr.bf16.mxu0 0
        %2302 = vmatpush2.bf16.msra.mxu0 0
        %2303 = vmatprep.subr.bf16.mxu0 0
        %2304 = vmatpush2.bf16.msra.mxu0 0
        %2305 = vmatprep.subr.bf16.mxu0 0
        %2306 = vmatpush2.bf16.msra.mxu0 0
        %2307 = vmatprep.subr.bf16.mxu0 0
        %2308 = vmatpush2.bf16.msra.mxu0 0
        %2309 = vmatprep.subr.bf16.mxu0 0
        %2310 = vmatpush2.bf16.msra.mxu0 0
        %2311 = vmatprep.subr.bf16.mxu0 0
        %2312 = vmatpush2.bf16.msra.mxu0 0
        %2313 = vmatprep.subr.bf16.mxu0 0
        %2314 = vmatpush2.bf16.msra.mxu0 0
        %2315 = vmatprep.subr.bf16.mxu0 0
        %2316 = vmatpush2.bf16.msra.mxu0 0
        %2317 = vmatprep.mubr.bf16.mxu0 0
        %2318 = vmatmul.mubr.bf16.gmra.mxu0 %v2283
        %v2319 = vpop.f32.mrf.mxu0
        %v2320 = vadd.f32 0.0, %v2319
        %v2321 = vpop.f32.mrf.mxu0
        %v2322 = vpop.f32.mrf.mxu0
        %v2323 = vadd.f32 0.0, %v2322
        %v2324 = vpop.f32.mrf.mxu0
        %2325 = vdwg.mxu0
        %v2326 = vadd.f32 %v2152, %v2208
        %v2327 = vadd.f32 %v2326, %v2264
        %v2328 = vadd.f32 %v2327, %v2320
        %v2329 = vadd.f32 %v2155, %v2211
        %v2330 = vadd.f32 %v2329, %v2267
        %v2331 = vadd.f32 %v2330, %v2323
        %v2332 = vld [vmem:[%s7] sm:$0x1]
        %v2334 = vlaneseq
        %v2335 = vshrl.u32 %v2334, 7
        %v2336 = vsub.s32 0, %v2335
        %v2337 = vrot.slane %v2332, %v2336
        %v2339 = vadd.f32 %v2328, %v2337
        %v2340 = vadd.f32 %v2331, %v2337
        %v2341 = vadd.f32 %v613, %v2339
        %v2342 = vadd.f32 %v614, %v2340
        %v2343 = vld [vmem:[%s8] sm:$0x1]
        %v2344 = vld [vmem:[%s9] sm:$0x1]
        %2345 = vadd.xlane.f32.xlu0 %v2341
        %v2346 = vpop.xlane.xlu0 %2345
        %2347 = vadd.xlane.f32.xlu0 %v2342
        %v2348 = vpop.xlane.xlu0 %2347
        %v2349 = vmul.f32 %v2346, %v627
        %v2350 = vmul.f32 %v2348, %v627
        %v2351 = vsub.f32 %v2341, %v2349
        %v2352 = vsub.f32 %v2342, %v2350
        %v2353 = vmul.f32 %v2351, %v2351
        %v2354 = vmul.f32 %v2352, %v2352
        %2355 = vadd.xlane.f32.xlu0 %v2353
        %v2356 = vpop.xlane.xlu0 %2355
        %2357 = vadd.xlane.f32.xlu0 %v2354
        %v2358 = vpop.xlane.xlu0 %2357
        %v2359 = vmul.f32 %v2356, %v638
        %v2360 = vmul.f32 %v2358, %v638
        %v2361 = vrsqrt.pop %v2359
        %v2362 = vmul.f32 %v2359, %v2361
        %vm2363 = vcmp.eq.f32.partialorder %v2359, inf
        %v2364 = vsel %vm2363, %v2359, %v2362
        %vm2365 = vcmp.eq.f32.partialorder %v2359, 0.0
        %v2366 = vand.u32 %v2359, 2147483648
        %v2367 = vsel %vm2365, %v2366, %v2364
        %v2368 = vrsqrt.pop %v2360
        %v2369 = vmul.f32 %v2360, %v2368
        %vm2370 = vcmp.eq.f32.partialorder %v2360, inf
        %v2371 = vsel %vm2370, %v2360, %v2369
        %vm2372 = vcmp.eq.f32.partialorder %v2360, 0.0
        %v2373 = vand.u32 %v2360, 2147483648
        %v2374 = vsel %vm2372, %v2373, %v2371
        %v2376 = vlaneseq
        %v2377 = vshrl.u32 %v2376, 7
        %v2378 = vsub.s32 0, %v2377
        %v2379 = vrot.slane %v2343, %v2378
        %v2381 = vmul.f32 %v2379, %v2351
        %v2382 = vmul.f32 %v2379, %v2352
        %v2383 = vadd.f32 %v2367, 1e-06
        %v2384 = vadd.f32 %v2374, 1e-06
        %v2385 = vrcp.pop %v2383
        %v2386 = vmul.f32 %v2381, %v2385
        %v2387 = vrcp.pop %v2384
        %v2388 = vmul.f32 %v2382, %v2387
        %v2390 = vlaneseq
        %v2391 = vshrl.u32 %v2390, 7
        %v2392 = vsub.s32 0, %v2391
        %v2393 = vrot.slane %v2344, %v2392
        %v2395 = vadd.f32 %v2386, %v2393
        %v2396 = vadd.f32 %v2388, %v2393
        %v2397 = vpack.c.bf16 %v2396, %v2395
        %v2398 = vld [vmem:[#allocation13] sm:$0xff]
        %v2399 = vld [vmem:[#allocation13 + $0x8] sm:$0xff]
        %v2400 = vld [vmem:[#allocation13 + $0x10] sm:$0xff]
        %v2401 = vld [vmem:[#allocation13 + $0x18] sm:$0xff]
        %v2402 = vld [vmem:[#allocation13 + $0x20] sm:$0xff]
        %v2403 = vld [vmem:[#allocation13 + $0x28] sm:$0xff]
        %v2404 = vld [vmem:[#allocation13 + $0x30] sm:$0xff]
        %v2405 = vld [vmem:[#allocation13 + $0x38] sm:$0xff]
        %v2406 = vld [vmem:[#allocation13 + $0x40] sm:$0xff]
        %v2407 = vld [vmem:[#allocation13 + $0x48] sm:$0xff]
        %v2408 = vld [vmem:[#allocation13 + $0x50] sm:$0xff]
        %v2409 = vld [vmem:[#allocation13 + $0x58] sm:$0xff]
        %v2410 = vld [vmem:[#allocation13 + $0x60] sm:$0xff]
        %v2411 = vld [vmem:[#allocation13 + $0x68] sm:$0xff]
        %v2412 = vld [vmem:[#allocation13 + $0x70] sm:$0xff]
        %v2413 = vld [vmem:[#allocation13 + $0x78] sm:$0xff]
        %v2414 = vld [vmem:[%s11] sm:$0x3]
        %v2416 = vlaneseq
        %v2417 = vshrl.u32 %v2416, 7
        %v2418 = vsub.s32 0, %v2417
        %v2419 = vrot.slane %v2414, %v2418
        %v2420 = vlaneseq
        %v2421 = vshrl.u32 %v2420, 7
        %v2422 = vsub.s32 1, %v2421
        %v2423 = vrot.slane %v2414, %v2422
        %v2442 = vunpack.c.l.b16 %v2398
        %v2443 = vunpack.c.h.b16 %v2398
        %v2444 = vunpack.c.l.b16 %v2399
        %v2445 = vunpack.c.h.b16 %v2399
        %v2446 = vunpack.c.l.b16 %v2400
        %v2447 = vunpack.c.h.b16 %v2400
        %v2448 = vunpack.c.l.b16 %v2401
        %v2449 = vunpack.c.h.b16 %v2401
        %v2450 = vunpack.c.l.b16 %v2402
        %v2451 = vunpack.c.h.b16 %v2402
        %v2452 = vunpack.c.l.b16 %v2403
        %v2453 = vunpack.c.h.b16 %v2403
        %v2454 = vunpack.c.l.b16 %v2404
        %v2455 = vunpack.c.h.b16 %v2404
        %v2456 = vunpack.c.l.b16 %v2405
        %v2457 = vunpack.c.h.b16 %v2405
        %v2458 = vunpack.c.l.b16 %v2406
        %v2459 = vunpack.c.h.b16 %v2406
        %v2460 = vunpack.c.l.b16 %v2407
        %v2461 = vunpack.c.h.b16 %v2407
        %v2462 = vunpack.c.l.b16 %v2408
        %v2463 = vunpack.c.h.b16 %v2408
        %v2464 = vunpack.c.l.b16 %v2409
        %v2465 = vunpack.c.h.b16 %v2409
        %v2466 = vunpack.c.l.b16 %v2410
        %v2467 = vunpack.c.h.b16 %v2410
        %v2468 = vunpack.c.l.b16 %v2411
        %v2469 = vunpack.c.h.b16 %v2411
        %v2470 = vunpack.c.l.b16 %v2412
        %v2471 = vunpack.c.h.b16 %v2412
        %v2472 = vunpack.c.l.b16 %v2413
        %v2473 = vunpack.c.h.b16 %v2413
        %v2474 = vpack.c.b16 %v2444, %v2442
        %v2475 = vpack.c.b16 %v2445, %v2443
        %v2476 = vpack.c.b16 %v2448, %v2446
        %v2477 = vpack.c.b16 %v2449, %v2447
        %v2478 = vpack.c.b16 %v2452, %v2450
        %v2479 = vpack.c.b16 %v2453, %v2451
        %v2480 = vpack.c.b16 %v2456, %v2454
        %v2481 = vpack.c.b16 %v2457, %v2455
        %v2482 = vpack.c.b16 %v2460, %v2458
        %v2483 = vpack.c.b16 %v2461, %v2459
        %v2484 = vpack.c.b16 %v2464, %v2462
        %v2485 = vpack.c.b16 %v2465, %v2463
        %v2486 = vpack.c.b16 %v2468, %v2466
        %v2487 = vpack.c.b16 %v2469, %v2467
        %v2488 = vpack.c.b16 %v2472, %v2470
        %v2489 = vpack.c.b16 %v2473, %v2471
        %2506 = vmatprep.subr.bf16.mxu0 %v2489
        %2507 = vmatpush1.bf16.msra.mxu0 %v2488
        %2508 = vmatprep.subr.bf16.mxu0 %v2487
        %2509 = vmatpush1.bf16.msra.mxu0 %v2486
        %2510 = vmatprep.subr.bf16.mxu0 %v2485
        %2511 = vmatpush1.bf16.msra.mxu0 %v2484
        %2512 = vmatprep.subr.bf16.mxu0 %v2483
        %2513 = vmatpush1.bf16.msra.mxu0 %v2482
        %2514 = vmatprep.subr.bf16.mxu0 %v2481
        %2515 = vmatpush1.bf16.msra.mxu0 %v2480
        %2516 = vmatprep.subr.bf16.mxu0 %v2479
        %2517 = vmatpush1.bf16.msra.mxu0 %v2478
        %2518 = vmatprep.subr.bf16.mxu0 %v2477
        %2519 = vmatpush1.bf16.msra.mxu0 %v2476
        %2520 = vmatprep.subr.bf16.mxu0 %v2475
        %2521 = vmatpush1.bf16.msra.mxu0 %v2474
        %2522 = vmatprep.subr.bf16.mxu0 0
        %2523 = vmatpush2.bf16.msra.mxu0 0
        %2524 = vmatprep.subr.bf16.mxu0 0
        %2525 = vmatpush2.bf16.msra.mxu0 0
        %2526 = vmatprep.subr.bf16.mxu0 0
        %2527 = vmatpush2.bf16.msra.mxu0 0
        %2528 = vmatprep.subr.bf16.mxu0 0
        %2529 = vmatpush2.bf16.msra.mxu0 0
        %2530 = vmatprep.subr.bf16.mxu0 0
        %2531 = vmatpush2.bf16.msra.mxu0 0
        %2532 = vmatprep.subr.bf16.mxu0 0
        %2533 = vmatpush2.bf16.msra.mxu0 0
        %2534 = vmatprep.subr.bf16.mxu0 0
        %2535 = vmatpush2.bf16.msra.mxu0 0
        %2536 = vmatprep.subr.bf16.mxu0 0
        %2537 = vmatpush2.bf16.msra.mxu0 0
        %2538 = vmatprep.mubr.bf16.mxu0 0
        %2539 = vmatmul.mubr.bf16.gmra.mxu0 %v2397
        %v2540 = vpop.f32.mrf.mxu0
        %v2541 = vadd.f32 %v2419, %v2540
        %v2542 = vpop.f32.mrf.mxu0
        %v2543 = vadd.f32 %v2423, %v2542
        %v2544 = vpop.f32.mrf.mxu0
        %v2545 = vadd.f32 %v2419, %v2544
        %v2546 = vpop.f32.mrf.mxu0
        %v2547 = vadd.f32 %v2423, %v2546
        %2548 = vdwg.mxu0
        %v2549 = vmax.f32 %v2541, 0.0
        %v2550 = vmax.f32 %v2543, 0.0
        %v2551 = vmax.f32 %v2545, 0.0
        %v2552 = vmax.f32 %v2547, 0.0
        %v2553 = vpack.c.bf16 %v2551, %v2549
        %v2554 = vpack.c.bf16 %v2552, %v2550
        %v2555 = vld [vmem:[#allocation14] sm:$0xf]
        %v2556 = vld [vmem:[#allocation14 + $0x4] sm:$0xf]
        %v2557 = vld [vmem:[#allocation14 + $0x8] sm:$0xf]
        %v2558 = vld [vmem:[#allocation14 + $0xc] sm:$0xf]
        %v2559 = vld [vmem:[#allocation14 + $0x10] sm:$0xf]
        %v2560 = vld [vmem:[#allocation14 + $0x14] sm:$0xf]
        %v2561 = vld [vmem:[#allocation14 + $0x18] sm:$0xf]
        %v2562 = vld [vmem:[#allocation14 + $0x1c] sm:$0xf]
        %v2563 = vld [vmem:[#allocation14 + $0x20] sm:$0xf]
        %v2564 = vld [vmem:[#allocation14 + $0x24] sm:$0xf]
        %v2565 = vld [vmem:[#allocation14 + $0x28] sm:$0xf]
        %v2566 = vld [vmem:[#allocation14 + $0x2c] sm:$0xf]
        %v2567 = vld [vmem:[#allocation14 + $0x30] sm:$0xf]
        %v2568 = vld [vmem:[#allocation14 + $0x34] sm:$0xf]
        %v2569 = vld [vmem:[#allocation14 + $0x38] sm:$0xf]
        %v2570 = vld [vmem:[#allocation14 + $0x3c] sm:$0xf]
        %v2571 = vld [vmem:[#allocation14 + $0x40] sm:$0xf]
        %v2572 = vld [vmem:[#allocation14 + $0x44] sm:$0xf]
        %v2573 = vld [vmem:[#allocation14 + $0x48] sm:$0xf]
        %v2574 = vld [vmem:[#allocation14 + $0x4c] sm:$0xf]
        %v2575 = vld [vmem:[#allocation14 + $0x50] sm:$0xf]
        %v2576 = vld [vmem:[#allocation14 + $0x54] sm:$0xf]
        %v2577 = vld [vmem:[#allocation14 + $0x58] sm:$0xf]
        %v2578 = vld [vmem:[#allocation14 + $0x5c] sm:$0xf]
        %v2579 = vld [vmem:[#allocation14 + $0x60] sm:$0xf]
        %v2580 = vld [vmem:[#allocation14 + $0x64] sm:$0xf]
        %v2581 = vld [vmem:[#allocation14 + $0x68] sm:$0xf]
        %v2582 = vld [vmem:[#allocation14 + $0x6c] sm:$0xf]
        %v2583 = vld [vmem:[#allocation14 + $0x70] sm:$0xf]
        %v2584 = vld [vmem:[#allocation14 + $0x74] sm:$0xf]
        %v2585 = vld [vmem:[#allocation14 + $0x78] sm:$0xf]
        %v2586 = vld [vmem:[#allocation14 + $0x7c] sm:$0xf]
        %v2587 = vld [vmem:[%s13] sm:$0x1]
        %v2589 = vlaneseq
        %v2590 = vshrl.u32 %v2589, 7
        %v2591 = vsub.s32 0, %v2590
        %v2592 = vrot.slane %v2587, %v2591
        %v2626 = vunpack.c.l.b16 %v2555
        %v2627 = vunpack.c.l.b16 %v2556
        %v2628 = vunpack.c.l.b16 %v2557
        %v2629 = vunpack.c.l.b16 %v2558
        %v2630 = vunpack.c.l.b16 %v2559
        %v2631 = vunpack.c.l.b16 %v2560
        %v2632 = vunpack.c.l.b16 %v2561
        %v2633 = vunpack.c.l.b16 %v2562
        %v2634 = vunpack.c.l.b16 %v2563
        %v2635 = vunpack.c.l.b16 %v2564
        %v2636 = vunpack.c.l.b16 %v2565
        %v2637 = vunpack.c.l.b16 %v2566
        %v2638 = vunpack.c.l.b16 %v2567
        %v2639 = vunpack.c.l.b16 %v2568
        %v2640 = vunpack.c.l.b16 %v2569
        %v2641 = vunpack.c.l.b16 %v2570
        %v2642 = vunpack.c.l.b16 %v2571
        %v2643 = vunpack.c.l.b16 %v2572
        %v2644 = vunpack.c.l.b16 %v2573
        %v2645 = vunpack.c.l.b16 %v2574
        %v2646 = vunpack.c.l.b16 %v2575
        %v2647 = vunpack.c.l.b16 %v2576
        %v2648 = vunpack.c.l.b16 %v2577
        %v2649 = vunpack.c.l.b16 %v2578
        %v2650 = vunpack.c.l.b16 %v2579
        %v2651 = vunpack.c.l.b16 %v2580
        %v2652 = vunpack.c.l.b16 %v2581
        %v2653 = vunpack.c.l.b16 %v2582
        %v2654 = vunpack.c.l.b16 %v2583
        %v2655 = vunpack.c.l.b16 %v2584
        %v2656 = vunpack.c.l.b16 %v2585
        %v2657 = vunpack.c.l.b16 %v2586
        %v2658 = vpack.c.b16 %v2627, %v2626
        %v2659 = vpack.c.b16 %v2629, %v2628
        %v2660 = vpack.c.b16 %v2631, %v2630
        %v2661 = vpack.c.b16 %v2633, %v2632
        %v2662 = vpack.c.b16 %v2635, %v2634
        %v2663 = vpack.c.b16 %v2637, %v2636
        %v2664 = vpack.c.b16 %v2639, %v2638
        %v2665 = vpack.c.b16 %v2641, %v2640
        %v2666 = vpack.c.b16 %v2643, %v2642
        %v2667 = vpack.c.b16 %v2645, %v2644
        %v2668 = vpack.c.b16 %v2647, %v2646
        %v2669 = vpack.c.b16 %v2649, %v2648
        %v2670 = vpack.c.b16 %v2651, %v2650
        %v2671 = vpack.c.b16 %v2653, %v2652
        %v2672 = vpack.c.b16 %v2655, %v2654
        %v2673 = vpack.c.b16 %v2657, %v2656
        %2690 = vmatprep.subr.bf16.mxu0 0
        %2691 = vmatpush1.bf16.msra.mxu0 %v2665
        %2692 = vmatprep.subr.bf16.mxu0 0
        %2693 = vmatpush1.bf16.msra.mxu0 %v2664
        %2694 = vmatprep.subr.bf16.mxu0 0
        %2695 = vmatpush1.bf16.msra.mxu0 %v2663
        %2696 = vmatprep.subr.bf16.mxu0 0
        %2697 = vmatpush1.bf16.msra.mxu0 %v2662
        %2698 = vmatprep.subr.bf16.mxu0 0
        %2699 = vmatpush1.bf16.msra.mxu0 %v2661
        %2700 = vmatprep.subr.bf16.mxu0 0
        %2701 = vmatpush1.bf16.msra.mxu0 %v2660
        %2702 = vmatprep.subr.bf16.mxu0 0
        %2703 = vmatpush1.bf16.msra.mxu0 %v2659
        %2704 = vmatprep.subr.bf16.mxu0 0
        %2705 = vmatpush1.bf16.msra.mxu0 %v2658
        %2706 = vmatprep.subr.bf16.mxu0 0
        %2707 = vmatpush2.bf16.msra.mxu0 %v2673
        %2708 = vmatprep.subr.bf16.mxu0 0
        %2709 = vmatpush2.bf16.msra.mxu0 %v2672
        %2710 = vmatprep.subr.bf16.mxu0 0
        %2711 = vmatpush2.bf16.msra.mxu0 %v2671
        %2712 = vmatprep.subr.bf16.mxu0 0
        %2713 = vmatpush2.bf16.msra.mxu0 %v2670
        %2714 = vmatprep.subr.bf16.mxu0 0
        %2715 = vmatpush2.bf16.msra.mxu0 %v2669
        %2716 = vmatprep.subr.bf16.mxu0 0
        %2717 = vmatpush2.bf16.msra.mxu0 %v2668
        %2718 = vmatprep.subr.bf16.mxu0 0
        %2719 = vmatpush2.bf16.msra.mxu0 %v2667
        %2720 = vmatprep.subr.bf16.mxu0 0
        %2721 = vmatpush2.bf16.msra.mxu0 %v2666
        %2722 = vmatprep.mubr.bf16.mxu0 %v2554
        %2723 = vmatmul.mubr.bf16.gmra.mxu0 %v2553
        %v2724 = vpop.f32.mrf.mxu0
        %v2725 = vadd.f32 %v2592, %v2724
        %v2726 = vpop.f32.mrf.mxu0
        %v2727 = vpop.f32.mrf.mxu0
        %v2728 = vadd.f32 %v2592, %v2727
        %v2729 = vpop.f32.mrf.mxu0
        %2730 = vdwg.mxu0
        %v2731 = vadd.f32 %v2341, %v2725
        %v2732 = vadd.f32 %v2342, %v2728
        %2733 = vst [vmem:[%s608] sm:$0xff] %v2731
        %2734 = vst [vmem:[%s608 + $0x8] sm:$0xff] %v2732
        %s2735 = sand.u32 %s349, 1
        %s2736 = scalar_lea.sflag [#allocation4], %s2735
        %s2737 = sand.u32 %s349, 1
        %s2738 = smul.addr %s2737, 16
        %s2739 = scalar_lea.vmem [#allocation16], %s2738
        // Predicated region
        $region109: #{tpu_custom_call.1} parent=75 // pred_check
          %p2740 = pneg %p359
        $region110: #{tpu_custom_call.1} parent=75 // pred_check_branch
          %2742 = sbr.rel (%p2740) target = $region112
        $region111: #{tpu_custom_call.1} parent=75 // pred_region
          %s2743 = smul.u32 2, %s37
          %s2745 = ssub.s32 256, 256
          %2746 = vsyncadd %s2736, %s2745
          %s2747 = smul.addr %s2743, 128
          %s2748 = scalar_lea.hbm %s14, %s2747
          %s2749 = sshll.u32 %s2739, 4
          %s2750 = int_to_ptr.vmem [resolvable:$true] %s2749
          %2755 = dma.vmem_to_hbm [thread:$0]  %s2750, 256, %s2748, %s2736, 128, 128, 8
        $region112: #{tpu_custom_call.1} parent=75 // pred_fallthru
          _
      $region76: #{tpu_custom_call.1} parent=5 // pred_fallthru
        _
      %p2756 = scmp.le.s32.totalorder 2, %s32
      // Predicated region
      $region113: #{tpu_custom_call.1} parent=5 // pred_check
        %p2757 = pneg %p2756
      $region114: #{tpu_custom_call.1} parent=5 // pred_check_branch
        %2759 = sbr.rel (%p2757) target = $region116
      $region115: #{tpu_custom_call.1} parent=5 // pred_region
        %s2760 = ssub.s32 %s32, 2
        // Predicated region
        $region117: #{tpu_custom_call.1} parent=115 // pred_check
          %p2761 = pneg %p365
        $region118: #{tpu_custom_call.1} parent=115 // pred_check_branch
          %2763 = sbr.rel (%p2761) target = $region120
        $region119: #{tpu_custom_call.1} parent=115 // pred_region
          %s2764 = sand.u32 %s350, 1
          %s2765 = scalar_lea.sflag [#allocation4], %s2764
          %s2766 = sand.u32 %s350, 1
          %s2767 = smul.addr %s2766, 16
          %s2768 = scalar_lea.vmem [#allocation16], %s2767
          %2769 = dma.done %s2765, 256
        $region120: #{tpu_custom_call.1} parent=115 // pred_fallthru
          _
      $region116: #{tpu_custom_call.1} parent=5 // pred_fallthru
        _
    $region6: #{tpu_custom_call.1} parent=1 // loop_footer
      %s36 = sadd.s32 1, %s32
    $region7: #{tpu_custom_call.1} parent=1 // loop_footer_branch
      %31 = sbr.rel target = $region3
    $region8: #{tpu_custom_call.1} parent=1 // loop_exit
      _
    %2770 = vsyncpa [#allocation3], 1
    %s2771 = scalar_lea.sflag [#allocation3], 1
    %2772 = vsyncpa %s2771, 1
    %2773 = vsyncpa [#allocation6], 1
    %s2774 = scalar_lea.sflag [#allocation6], 1
    %2775 = vsyncpa %s2774, 1
    %2776 = vsyncpa [#allocation9], 1
    %2777 = vsyncpa [#allocation12], 1
    %2778 = vsyncpa [#allocation15], 1
    %2779 = vsyncpa [#allocation4], 1
    %s2780 = scalar_lea.sflag [#allocation4], 1
    %2781 = vsyncpa %s2780, 1

</llo_original>
